<compile_context>
chip_gen: v7x
topology: tpu7x:2x2x1
jax: 0.10.0
libtpu: 0.0.40
codegen_flags: <defaults>
</compile_context>

<pallas_src>
import functools
import math

import jax
import jax.numpy as jnp
import numpy as np
from jax.experimental import pallas as pl
from jax.experimental.pallas import tpu as pltpu


_MASK_PAD = -1e30  # finite "minus infinity" used for padded key columns


def _pick_tile(dim, candidates):
    """Largest candidate tile that divides `dim`, else the full dim."""
    for c in candidates:
        if c <= dim and dim % c == 0:
            return c
    return dim


# ---------------------------------------------------------------------------
# 1) QKV projection: tiled matmul + bias (packed (M, 3E) output)
# ---------------------------------------------------------------------------
def _matmul_bias_kernel(x_ref, w_ref, b_ref, o_ref, acc_ref):
    @pl.when(pl.program_id(2) == 0)
    def _():
        acc_ref[...] = jnp.zeros_like(acc_ref)

    acc_ref[...] += jnp.dot(x_ref[...], w_ref[...],
                            preferred_element_type=jnp.float32)

    @pl.when(pl.program_id(2) == pl.num_programs(2) - 1)
    def _():
        o_ref[...] = (acc_ref[...] + b_ref[...]).astype(o_ref.dtype)


def _linear(x2d, w, b, *, out_dtype, compute_dtype):
    M, K = x2d.shape
    K2, N = w.shape
    assert K == K2
    tm = _pick_tile(M, (512, 256, 128))
    tn = _pick_tile(N, (512, 256, 128))
    tk = _pick_tile(K, (512, 256, 128))

    xc = x2d.astype(compute_dtype)          # bf16 operands for the MXU
    wc = w.astype(compute_dtype)
    b2 = b.reshape(1, N).astype(jnp.float32)  # bias added in f32

    # Grid (N, M, K): the streamed weight strip is reused across consecutive
    # row tiles when K fits in one k-tile; K innermost for accumulation.
    return pl.pallas_call(
        _matmul_bias_kernel,
        out_shape=jax.ShapeDtypeStruct((M, N), out_dtype),
        grid_spec=pltpu.PrefetchScalarGridSpec(
            num_scalar_prefetch=0,
            grid=(N // tn, M // tm, K // tk),
            in_specs=[
                pl.BlockSpec((tm, tk), lambda j, i, k: (i, k)),
                pl.BlockSpec((tk, tn), lambda j, i, k: (k, j)),
                pl.BlockSpec((1, tn), lambda j, i, k: (0, j)),
            ],
            out_specs=pl.BlockSpec((tm, tn), lambda j, i, k: (i, j)),
            scratch_shapes=[pltpu.VMEM((tm, tn), jnp.float32)],
        ),
        compiler_params=pltpu.CompilerParams(
            dimension_semantics=("parallel", "parallel", "arbitrary")),
    )(xc, wc, b2)


# ---------------------------------------------------------------------------
# 2) Flash attention over head groups, reading the packed (B, T, 3E) qkv
# ---------------------------------------------------------------------------
def _flash_attn_kernel(q_ref, k_ref, v_ref, mask_ref, o_ref,
                       m_scr, l_scr, acc_scr, *, heads_per_group, head_dim):
    G, D = heads_per_group, head_dim
    kv = pl.program_id(3)

    @pl.when(kv == 0)
    def _():
        m_scr[...] = jnp.full_like(m_scr, -jnp.inf)
        l_scr[...] = jnp.zeros_like(l_scr)
        acc_scr[...] = jnp.zeros_like(acc_scr)

    q_blk = q_ref[0]      # (tq,  G*D) bf16, lane-dense block
    k_blk = k_ref[0]      # (tkv, G*D)
    v_blk = v_ref[0]      # (tkv, G*D)

    per_head_mask = mask_ref.shape[1] > 1

    for r in range(G):                       # unrolled; G is small (1 / 2 / 4)
        q_r = q_blk[:, r * D:(r + 1) * D]
        k_r = k_blk[:, r * D:(r + 1) * D]
        v_r = v_blk[:, r * D:(r + 1) * D]

        # Contract over D of both operands -> no explicit k.T transpose.
        s = jax.lax.dot_general(q_r, k_r, (((1,), (1,)), ((), ())),
                                preferred_element_type=jnp.float32)
        m_add = mask_ref[0, r] if per_head_mask else mask_ref[0, 0]
        s = s + m_add.astype(jnp.float32)    # 1/sqrt(D) already folded into W_q

        # Online softmax, statistics in f32.
        m_prev = m_scr[r]
        m_new = jnp.maximum(m_prev, jnp.max(s, axis=-1, keepdims=True))
        # -inf safe: fully masked rows keep l == 0 / acc == 0 (no NaN poison).
        m_safe = jnp.where(m_new == -jnp.inf, jnp.float32(0.0), m_new)
        alpha = jnp.exp(m_prev - m_safe)
        p = jnp.exp(s - m_safe)
        l_scr[r] = alpha * l_scr[r] + jnp.sum(p, axis=-1, keepdims=True)
        acc_scr[r] = alpha * acc_scr[r] + jax.lax.dot_general(
            p.astype(v_r.dtype), v_r, (((1,), (0,)), ((), ())),
            preferred_element_type=jnp.float32)
        m_scr[r] = m_new

    @pl.when(kv == pl.num_programs(3) - 1)
    def _():
        # Lane-dense (tq, G*D) store: the group's heads concatenated on lanes.
        # pl.reciprocal(approx=True): EUP reciprocal, small relative error in
        # the softmax denominator, fine for bf16 outputs.
        outs = [acc_scr[r] * pl.reciprocal(l_scr[r], approx=True)
                for r in range(G)]
        o_ref[0, 0] = jnp.concatenate(outs, axis=-1).astype(o_ref.dtype)


def _flash_attention_packed(qkv, mask, *, num_head, head_group, out_dtype):
    B, Tp, E3 = qkv.shape
    E = E3 // 3
    H, G = num_head, head_group
    D = E // H
    HG = H // G
    GD = G * D

    tq = _pick_tile(Tp, (512, 256, 128))
    tkv = _pick_tile(Tp, (256, 128))

    mB, mH = mask.shape[0], mask.shape[1]
    if mH == 1:
        mask_block = (1, 1, tq, tkv)
        mask_idx = lambda b, h, qi, ki: ((b if mB > 1 else 0), 0, qi, ki)
    else:
        mask_block = (1, G, tq, tkv)
        mask_idx = lambda b, h, qi, ki: ((b if mB > 1 else 0), h, qi, ki)

    kernel = functools.partial(_flash_attn_kernel,
                               heads_per_group=G, head_dim=D)

    return pl.pallas_call(
        kernel,
        out_shape=jax.ShapeDtypeStruct((B, HG, Tp, GD), out_dtype),
        grid_spec=pltpu.PrefetchScalarGridSpec(
            num_scalar_prefetch=0,
            grid=(B, HG, Tp // tq, Tp // tkv),
            in_specs=[
                # q / k / v read directly from the packed (B, T, 3E) buffer;
                # the last-dim block index selects (which, head-group).
                pl.BlockSpec((1, tq, GD), lambda b, h, qi, ki: (b, qi, h)),
                pl.BlockSpec((1, tkv, GD),
                             lambda b, h, qi, ki: (b, ki, HG + h)),
                pl.BlockSpec((1, tkv, GD),
                             lambda b, h, qi, ki: (b, ki, 2 * HG + h)),
                pl.BlockSpec(mask_block, mask_idx),
            ],
            out_specs=pl.BlockSpec((1, 1, tq, GD),
                                   lambda b, h, qi, ki: (b, h, qi, 0)),
            scratch_shapes=[
                pltpu.VMEM((G, tq, 1), jnp.float32),   # running max m
                pltpu.VMEM((G, tq, 1), jnp.float32),   # running denom l
                pltpu.VMEM((G, tq, D), jnp.float32),   # output accumulator
            ],
        ),
        compiler_params=pltpu.CompilerParams(
            dimension_semantics=("parallel", "parallel", "parallel",
                                 "arbitrary")),
    )(qkv, qkv, qkv, mask)


# ---------------------------------------------------------------------------
# 3) Output projection consuming (B, H/G, T, G*D) directly (reduce over groups)
# ---------------------------------------------------------------------------
def _out_proj_kernel(x_ref, w_ref, b_ref, o_ref, acc_ref):
    @pl.when(pl.program_id(3) == 0)
    def _():
        acc_ref[...] = jnp.zeros_like(acc_ref)

    acc_ref[...] += jnp.dot(x_ref[0, 0], w_ref[0],
                            preferred_element_type=jnp.float32)

    @pl.when(pl.program_id(3) == pl.num_programs(3) - 1)
    def _():
        o_ref[0] = (acc_ref[...] + b_ref[...]).astype(o_ref.dtype)


def _out_proj(attn, w_r, bias, *, out_dtype, compute_dtype):
    B, HG, Tp, GD = attn.shape
    E = w_r.shape[-1]
    tm = _pick_tile(Tp, (512, 256, 128))
    tn = _pick_tile(E, (512, 256, 128))
    wc = w_r.astype(compute_dtype)
    b2 = bias.reshape(1, E).astype(jnp.float32)

    return pl.pallas_call(
        _out_proj_kernel,
        out_shape=jax.ShapeDtypeStruct((B, Tp, E), out_dtype),
        grid_spec=pltpu.PrefetchScalarGridSpec(
            num_scalar_prefetch=0,
            grid=(B, Tp // tm, E // tn, HG),
            in_specs=[
                pl.BlockSpec((1, 1, tm, GD), lambda b, i, j, h: (b, h, i, 0)),
                pl.BlockSpec((1, GD, tn), lambda b, i, j, h: (h, 0, j)),
                pl.BlockSpec((1, tn), lambda b, i, j, h: (0, j)),
            ],
            out_specs=pl.BlockSpec((1, tm, tn), lambda b, i, j, h: (b, i, j)),
            scratch_shapes=[pltpu.VMEM((tm, tn), jnp.float32)],
        ),
        compiler_params=pltpu.CompilerParams(
            dimension_semantics=("parallel", "parallel", "parallel",
                                 "arbitrary")),
    )(attn, wc, b2)


# ---------------------------------------------------------------------------
# Full module forward
# ---------------------------------------------------------------------------
def multi_head_attention(x, attn_mask, w_qkv, b_qkv, w_out, b_out, *,
                         num_head, compute_dtype=jnp.bfloat16):
    """x: [B, T, E]; attn_mask: additive float mask [B|1, 1|H, T, T] (or [T, T]).
    w_qkv: [E, 3E] (torch weight transposed), b_qkv: [3E]
    w_out: [E, E]  (torch weight transposed), b_out: [E]

    Note: bf16 MXU operands with f32 accumulation — inference-quality
    numerics, not a bit-exact f32 reference.
    """
    B, T, E = x.shape
    H = num_head
    assert E % H == 0
    D = E // H

    # Group heads so one group spans a lane-dense multiple of 128 (G=2 for D=64).
    G = 128 // math.gcd(D, 128)
    if H % G != 0:
        # TODO(synk): add an ungrouped per-head fallback when H % G != 0.
        raise NotImplementedError(
            f"num_head={H} must be a multiple of the head group size {G}")
    HG = H // G
    GD = G * D

    # Fold the softmax 1/sqrt(D) into the q-producing columns of the weights.
    scale = 1.0 / math.sqrt(D)
    w_qkv_s = jnp.concatenate([w_qkv[:, :E] * scale, w_qkv[:, E:]], axis=1)
    b_qkv_s = jnp.concatenate([b_qkv[:E] * scale, b_qkv[E:]], axis=0)

    # Pad T to a multiple of 128 so every BlockSpec keeps clean (8,128) tiles.
    Tp = ((T + 127) // 128) * 128
    x_p = jnp.pad(x, ((0, 0), (0, Tp - T), (0, 0))) if Tp != T else x

    mask = attn_mask
    if mask.ndim == 2:
        mask = mask[None, None]
    assert mask.ndim == 4 and mask.shape[-2:] == (T, T)
    mask = mask.astype(jnp.float32)
    if Tp != T:
        mask = jnp.pad(mask, ((0, 0), (0, 0), (0, Tp - T), (0, Tp - T)),
                       constant_values=_MASK_PAD)
    mask = mask.astype(jnp.bfloat16)   # halves the mask HBM stream

    # 1) QKV projection — output stays packed (B, Tp, 3E): no HBM transposes.
    qkv = _linear(x_p.reshape(B * Tp, E), w_qkv_s, b_qkv_s,
                  out_dtype=compute_dtype, compute_dtype=compute_dtype)
    qkv = qkv.reshape(B, Tp, 3 * E)

    # 2) Flash attention over head groups, reading q/k/v from the packed qkv.
    attn = _flash_attention_packed(qkv, mask, num_head=H, head_group=G,
                                   out_dtype=compute_dtype)  # (B, HG, Tp, GD)

    # 3) Output projection directly on (B, HG, Tp, GD); weight reshape is free.
    w_out_r = w_out.reshape(HG, GD, E)
    out = _out_proj(attn, w_out_r, b_out, out_dtype=x.dtype,
                    compute_dtype=compute_dtype)              # (B, Tp, E)
    return out[:, :T, :] if Tp != T else out


# ---------------------------------------------------------------------------
# Pure-JAX f32 reference mirroring the PyTorch forward
# ---------------------------------------------------------------------------
def _reference(x, attn_mask, w_qkv, b_qkv, w_out, b_out, num_head):
    B, T, E = x.shape
    H = num_head
    D = E // H
    qkv = jnp.einsum("bte,ef->btf", x, w_qkv) + b_qkv          # (B, T, 3E)
    qkv = qkv.reshape(B, T, 3, H, D)
    q = jnp.transpose(qkv[:, :, 0], (0, 2, 1, 3))              # (B, H, T, D)
    k = jnp.transpose(qkv[:, :, 1], (0, 2, 1, 3))
    v = jnp.transpose(qkv[:, :, 2], (0, 2, 1, 3))
    s = jnp.einsum("bhtd,bhsd->bhts", q, k) / math.sqrt(D) + attn_mask
    p = jax.nn.softmax(s, axis=-1)
    av = jnp.einsum("bhts,bhsd->bhtd", p, v)
    av = jnp.transpose(av, (0, 2, 1, 3)).reshape(B, T, E)
    return jnp.einsum("bte,ef->btf", av, w_out) + b_out


if __name__ == "__main__":
    key = jax.random.PRNGKey(0)
    # ViT-like config: D = 64 -> head groups of 2 give 128-lane blocks;
    # T = 200 exercises the non-divisible-sequence padding path (pads to 256).
    B, T, E, H = 2, 200, 256, 4

    k_x, k_m, k_wq, k_bq, k_wo, k_bo = jax.random.split(key, 6)
    wscale = E ** -0.5

    x = jax.random.normal(k_x, (B, T, E), dtype=jnp.float32)
    # additive float attention mask, head-broadcast shape [B, 1, T, T]
    attn_mask = jax.random.normal(k_m, (B, 1, T, T), dtype=jnp.float32) * 0.1

    # torch Linear layout: W [out, in], b [out]; pass transposed [in, out].
    w_qkv_t = jax.random.normal(k_wq, (3 * E, E), dtype=jnp.float32) * wscale
    b_qkv = jax.random.normal(k_bq, (3 * E,), dtype=jnp.float32) * 0.02
    w_out_t = jax.random.normal(k_wo, (E, E), dtype=jnp.float32) * wscale
    b_out = jax.random.normal(k_bo, (E,), dtype=jnp.float32) * 0.02

    w_qkv = w_qkv_t.T   # (E, 3E)
    w_out = w_out_t.T   # (E, E)

    out = multi_head_attention(x, attn_mask, w_qkv, b_qkv, w_out, b_out,
                               num_head=H)
    out = jax.block_until_ready(out)

    ref = _reference(x, attn_mask, w_qkv, b_qkv, w_out, b_out, H)
    # bf16 MXU operands / bf16 mask with f32 accumulation -> relaxed tolerance.
    np.testing.assert_allclose(np.asarray(out, dtype=np.float32),
                               np.asarray(ref, dtype=np.float32),
                               rtol=2e-2, atol=2e-2)
    print("KERNEL_OK")
</pallas_src>

<mosaic_0001>
module attributes {stable_mosaic.version = 11 : i64} {
  func.func @_matmul_bias_kernel(%arg0: i32, %arg1: i32, %arg2: i32, %arg3: memref<512x256xbf16, #tpu.memory_space<vmem>>, %arg4: memref<256x256xbf16, #tpu.memory_space<vmem>>, %arg5: memref<1x256xf32, #tpu.memory_space<vmem>>, %arg6: memref<512x256xbf16, #tpu.memory_space<vmem>>, %arg7: memref<512x256xf32, #tpu.memory_space<vmem>>) attributes {dimension_semantics = [#tpu.dimension_semantics<parallel>, #tpu.dimension_semantics<parallel>, #tpu.dimension_semantics<arbitrary>], iteration_bounds = array<i64: 3, 1, 1>, scalar_prefetch = 0 : i64, scratch_operands = 1 : i64, tpu.core_type = #tpu.core_type<tc>, window_params = [{transform_indices = @transform_0, window_bounds = array<i64: 512, 256>}, {transform_indices = @transform_1, window_bounds = array<i64: 256, 256>}, {transform_indices = @transform_2, window_bounds = array<i64: 1, 256>}, {transform_indices = @transform_3, window_bounds = array<i64: 512, 256>}]} {
    %c0_i32 = arith.constant 0 : i32
    %0 = arith.cmpi eq, %arg2, %c0_i32 : i32
    %1 = arith.extui %0 : i1 to i32
    %c0_i32_0 = arith.constant 0 : i32
    %2 = arith.cmpi ne, %1, %c0_i32_0 : i32
    scf.if %2 {
      %cst_10 = arith.constant 0.000000e+00 : f32
      %12 = vector.broadcast %cst_10 : f32 to vector<512x256xf32>
      %c0_11 = arith.constant 0 : index
      %c0_12 = arith.constant 0 : index
      %13 = vector.load %arg7[%c0_11, %c0_12] : memref<512x256xf32, #tpu.memory_space<vmem>>, vector<512x256xf32>
      tpu.vector_store %arg7[%c0_11, %c0_12], %12 {strides = array<i32>} : memref<512x256xf32, #tpu.memory_space<vmem>>, vector<512x256xf32>,
    } else {
    }
    %c0 = arith.constant 0 : index
    %c0_1 = arith.constant 0 : index
    %3 = vector.load %arg7[%c0, %c0_1] : memref<512x256xf32, #tpu.memory_space<vmem>>, vector<512x256xf32>
    %c0_2 = arith.constant 0 : index
    %c0_3 = arith.constant 0 : index
    %4 = vector.load %arg3[%c0_2, %c0_3] : memref<512x256xbf16, #tpu.memory_space<vmem>>, vector<512x256xbf16>
    %c0_4 = arith.constant 0 : index
    %c0_5 = arith.constant 0 : index
    %5 = vector.load %arg4[%c0_4, %c0_5] : memref<256x256xbf16, #tpu.memory_space<vmem>>, vector<256x256xbf16>
    %cst = arith.constant dense<0.000000e+00> : vector<512x256xf32>
    %6 = tpu.matmul %4, %5, %cst {dimension_numbers = #tpu.dot_dimension_numbers<[1], [0], [0], [1], [0, 0, 1, 1], [], []>} : vector<512x256xbf16>, vector<256x256xbf16>, vector<512x256xf32> -> vector<512x256xf32>
    %7 = arith.addf %3, %6 : vector<512x256xf32>
    %c0_6 = arith.constant 0 : index
    %c0_7 = arith.constant 0 : index
    %8 = vector.load %arg7[%c0_6, %c0_7] : memref<512x256xf32, #tpu.memory_space<vmem>>, vector<512x256xf32>
    tpu.vector_store %arg7[%c0_6, %c0_7], %7 {strides = array<i32>} : memref<512x256xf32, #tpu.memory_space<vmem>>, vector<512x256xf32>,
    %c0_i32_8 = arith.constant 0 : i32
    %9 = arith.cmpi eq, %arg2, %c0_i32_8 : i32
    %10 = arith.extui %9 : i1 to i32
    %c0_i32_9 = arith.constant 0 : i32
    %11 = arith.cmpi ne, %10, %c0_i32_9 : i32
    scf.if %11 {
      %c0_10 = arith.constant 0 : index
      %c0_11 = arith.constant 0 : index
      %12 = vector.load %arg7[%c0_10, %c0_11] : memref<512x256xf32, #tpu.memory_space<vmem>>, vector<512x256xf32>
      %c0_12 = arith.constant 0 : index
      %c0_13 = arith.constant 0 : index
      %13 = vector.load %arg5[%c0_12, %c0_13] : memref<1x256xf32, #tpu.memory_space<vmem>>, vector<1x256xf32>
      %14 = vector.broadcast %13 : vector<1x256xf32> to vector<512x256xf32>
      %15 = arith.addf %12, %14 : vector<512x256xf32>
      %16 = arith.truncf %15 : vector<512x256xf32> to vector<512x256xbf16>
      %c0_14 = arith.constant 0 : index
      %c0_15 = arith.constant 0 : index
      %17 = vector.load %arg6[%c0_14, %c0_15] : memref<512x256xbf16, #tpu.memory_space<vmem>>, vector<512x256xbf16>
      tpu.vector_store %arg6[%c0_14, %c0_15], %16 {strides = array<i32>} : memref<512x256xbf16, #tpu.memory_space<vmem>>, vector<512x256xbf16>,
    } else {
    }
    return
  }
  func.func @transform_0(%arg0: i32, %arg1: i32, %arg2: i32) -> (i32, i32) {
    %c0_i32 = arith.constant 0 : i32
    return %arg1, %arg2 : i32, i32
  }
  func.func @transform_1(%arg0: i32, %arg1: i32, %arg2: i32) -> (i32, i32) {
    %c0_i32 = arith.constant 0 : i32
    return %arg2, %arg0 : i32, i32
  }
  func.func @transform_2(%arg0: i32, %arg1: i32, %arg2: i32) -> (i32, i32) {
    %c0_i32 = arith.constant 0 : i32
    %c0_i32_0 = arith.constant 0 : i32
    return %c0_i32, %arg0 : i32, i32
  }
  func.func @transform_3(%arg0: i32, %arg1: i32, %arg2: i32) -> (i32, i32) {
    %c0_i32 = arith.constant 0 : i32
    return %arg1, %arg0 : i32, i32
  }
}

</mosaic_0001>

<llo_original>
// kernel: tpu_custom_call.1
$region0: #{tpu_custom_call.1}
  #allocation0 [shape = 'u32[]', space=smem, size = 0x4, offset = 0x4, fixed_abs, tag = 'smem constant byte address 0x4 - core index']
  #allocation1 [shape = 'u32[144,128]{1,0:T(1,128)}', space=vmem, size = 0x12000, scoped, tag = 'internal scratch']
  #allocation2 [shape = 'f32[512,256]{1,0:T(8,128)}', space=vmem, size = 0x80000, scoped, tag = 'scratch operand']
  %s0 = inlined_call_operand.hbm [shape: bf16[512,256], index: 0, kind: input, shape index: {}]
  %s1 = inlined_call_operand.hbm [shape: bf16[256,768], index: 1, kind: input, shape index: {}]
  %s2 = inlined_call_operand.vmem [shape: f32[1,768], index: 2, kind: input, shape index: {}]
  %s3 = inlined_call_operand.hbm [shape: bf16[512,768], index: 3, kind: output, shape index: {}]
  %s4 = sld [smem:[#allocation0]]
  $region61: #{tpu_custom_call.1} parent=0
    _
  %s6 = ssub.s32 1, %s4
  %s7 = scalar_select 0, %s6, %s4
  $region1: #{tpu_custom_call.1} parent=0
    #allocation3 [shape = 'u8[262144]{0}', space=vmem, size = 0x40000, scoped, tag = 'input window, operand 0, single buffered']
    #allocation4 [shape = 's32[2]{0}', space=sflag, size = 0x8, scoped, tag = 'scoped memory for tpu_custom_call.1']
    #allocation5 [shape = 's32[2]{0}', space=sflag, size = 0x8, scoped, tag = 'scoped memory for tpu_custom_call.1']
    #allocation6 [shape = 'u8[262144]{0}', space=vmem, size = 0x40000, scoped, tag = 'input window, operand 1']
    #allocation7 [shape = 's32[2]{0}', space=sflag, size = 0x8, scoped, tag = 'scoped memory for tpu_custom_call.1']
    #allocation8 [shape = 'u8[524288]{0}', space=vmem, size = 0x80000, scoped, tag = 'output window, operand 0']
    %8 = vsyncpa [#allocation4], 0
    %9 = vsyncpa [#allocation7], 0
    %s10 = scalar_lea.sflag [#allocation7], 1
    %11 = vsyncpa %s10, 0
    %12 = vsyncpa [#allocation5], 0
    %s13 = scalar_lea.sflag [#allocation5], 1
    %14 = vsyncpa %s13, 0
    loop: start=0, step=1, limit=5
    $region2: #{tpu_custom_call.1} parent=1 // loop_pre_header
      _
    $region3: #{tpu_custom_call.1} parent=1 // loop_header
      %s16 = sphi 0, %s20
      %p17 = scmp.ge.s32.totalorder %s16, 5
      %s23 = sphi 0, %s42
      %s24 = sphi 0, %s38
      %s25 = sphi 0, %s34
      %s26 = sphi 0, %s23
      %s27 = sphi 0, %s24
      %s28 = sphi 0, %s25
      %s29 = sphi 0, %s26
      %s30 = sphi 0, %s27
      %s31 = sphi 0, %s28
      %s47 = sphi 0, %s49
      %s50 = sphi 0, %s47
      %s51 = sphi 0, %s50
      %s67 = sphi 0, %s51
      %s75 = sphi 0, %s77
      %s78 = sphi 0, %s75
      %s79 = sphi 0, %s78
      %s95 = sphi 0, %s79
      %s101 = sphi 0, %s103
      %s104 = sphi 0, %s101
      %s105 = sphi 0, %s104
      %s121 = sphi 0, %s105
      %s129 = sphi 0, %s131
      %s132 = sphi 0, %s129
      %s133 = sphi 0, %s132
      %s149 = sphi 0, %s133
    $region4: #{tpu_custom_call.1} parent=1 // loop_header_branch
      %19 = sbr.rel (%p17) target = $region8
    $region5: #{tpu_custom_call.1} parent=1 // loop_body
      %s21 = ssub.s32 %s16, 1
      %s22 = ssub.s32 %s16, 2
      %s32 = sadd.s32 1, %s25
      %p33 = scmp.ge.s32.totalorder %s32, 1
      %s34 = scalar_select %p33, 0, %s32
      %s35 = sadd.s32 1, %s24
      %s36 = scalar_select %p33, %s35, %s24
      %p37 = scmp.ge.s32.totalorder %s36, 1
      %s38 = scalar_select %p37, 0, %s36
      %s39 = sadd.s32 1, %s23
      %s40 = scalar_select %p37, %s39, %s23
      %p41 = scmp.ge.s32.totalorder %s40, 3
      %s42 = scalar_select %p41, 0, %s40
      %s43 = ssub.s32 %s24, %s38
      %s44 = ssub.s32 %s25, %s34
      %s45 = sor.u32 %s43, %s44
      %p46 = scmp.eq.s32.totalorder %s45, 0
      %s48 = sadd.s32 %s47, 1
      %s49 = scalar_select %p46, %s47, %s48
      %p52 = pneg %p46
      %p53 = scmp.eq.s32.totalorder %s16, 2
      %p54 = por %p52, %p53
      %p55 = scmp.ne.s32.totalorder %s47, %s50
      %p56 = scmp.eq.s32.totalorder %s16, 0
      %p57 = por %p55, %p56
      %p58 = scmp.ne.s32.totalorder %s47, %s50
      %p59 = scmp.eq.s32.totalorder %s21, 2
      %p60 = por %p58, %p59
      %p61 = scmp.ne.s32.totalorder %s50, %s51
      %p62 = scmp.eq.s32.totalorder %s21, 0
      %p63 = por %p61, %p62
      %p64 = scmp.ne.s32.totalorder %s50, %s51
      %p65 = scmp.eq.s32.totalorder %s22, 2
      %p66 = por %p64, %p65
      %p68 = scmp.ne.s32.totalorder %s51, %s67
      %p69 = scmp.eq.s32.totalorder %s22, 0
      %p70 = por %p68, %p69
      %s71 = ssub.s32 %s25, %s34
      %s72 = ssub.s32 %s23, %s42
      %s73 = sor.u32 %s71, %s72
      %p74 = scmp.eq.s32.totalorder %s73, 0
      %s76 = sadd.s32 %s75, 1
      %s77 = scalar_select %p74, %s75, %s76
      %p80 = pneg %p74
      %p81 = scmp.eq.s32.totalorder %s16, 2
      %p82 = por %p80, %p81
      %p83 = scmp.ne.s32.totalorder %s75, %s78
      %p84 = scmp.eq.s32.totalorder %s16, 0
      %p85 = por %p83, %p84
      %p86 = scmp.ne.s32.totalorder %s75, %s78
      %p87 = scmp.eq.s32.totalorder %s21, 2
      %p88 = por %p86, %p87
      %p89 = scmp.ne.s32.totalorder %s78, %s79
      %p90 = scmp.eq.s32.totalorder %s21, 0
      %p91 = por %p89, %p90
      %p92 = scmp.ne.s32.totalorder %s78, %s79
      %p93 = scmp.eq.s32.totalorder %s22, 2
      %p94 = por %p92, %p93
      %p96 = scmp.ne.s32.totalorder %s79, %s95
      %p97 = scmp.eq.s32.totalorder %s22, 0
      %p98 = por %p96, %p97
      %s99 = ssub.s32 %s23, %s42
      %p100 = scmp.eq.s32.totalorder %s99, 0
      %s102 = sadd.s32 %s101, 1
      %s103 = scalar_select %p100, %s101, %s102
      %p106 = pneg %p100
      %p107 = scmp.eq.s32.totalorder %s16, 2
      %p108 = por %p106, %p107
      %p109 = scmp.ne.s32.totalorder %s101, %s104
      %p110 = scmp.eq.s32.totalorder %s16, 0
      %p111 = por %p109, %p110
      %p112 = scmp.ne.s32.totalorder %s101, %s104
      %p113 = scmp.eq.s32.totalorder %s21, 2
      %p114 = por %p112, %p113
      %p115 = scmp.ne.s32.totalorder %s104, %s105
      %p116 = scmp.eq.s32.totalorder %s21, 0
      %p117 = por %p115, %p116
      %p118 = scmp.ne.s32.totalorder %s104, %s105
      %p119 = scmp.eq.s32.totalorder %s22, 2
      %p120 = por %p118, %p119
      %p122 = scmp.ne.s32.totalorder %s105, %s121
      %p123 = scmp.eq.s32.totalorder %s22, 0
      %p124 = por %p122, %p123
      %s125 = ssub.s32 %s24, %s38
      %s126 = ssub.s32 %s23, %s42
      %s127 = sor.u32 %s125, %s126
      %p128 = scmp.eq.s32.totalorder %s127, 0
      %s130 = sadd.s32 %s129, 1
      %s131 = scalar_select %p128, %s129, %s130
      %p134 = pneg %p128
      %p135 = scmp.eq.s32.totalorder %s16, 2
      %p136 = por %p134, %p135
      %p137 = scmp.ne.s32.totalorder %s129, %s132
      %p138 = scmp.eq.s32.totalorder %s16, 0
      %p139 = por %p137, %p138
      %p140 = scmp.ne.s32.totalorder %s129, %s132
      %p141 = scmp.eq.s32.totalorder %s21, 2
      %p142 = por %p140, %p141
      %p143 = scmp.ne.s32.totalorder %s132, %s133
      %p144 = scmp.eq.s32.totalorder %s21, 0
      %p145 = por %p143, %p144
      %p146 = scmp.ne.s32.totalorder %s132, %s133
      %p147 = scmp.eq.s32.totalorder %s22, 2
      %p148 = por %p146, %p147
      %p150 = scmp.ne.s32.totalorder %s133, %s149
      %p151 = scmp.eq.s32.totalorder %s22, 0
      %p152 = por %p150, %p151
      %p153 = scmp.le.s32.totalorder 1, %s16
      %p154 = scmp.lt.s32.totalorder %s16, 4
      %p155 = pnand %p153, %p154
      %p156 = pneg %p155
      // Predicated region
      $region9: #{tpu_custom_call.1} parent=5 // pred_check
        _
      $region10: #{tpu_custom_call.1} parent=5 // pred_check_branch
        %158 = sbr.rel (%p155) target = $region12
      $region11: #{tpu_custom_call.1} parent=5 // pred_region
        %s159 = ssub.s32 %s16, 1
        // Predicated region
        $region13: #{tpu_custom_call.1} parent=11 // pred_check
          %p160 = pneg %p63
        $region14: #{tpu_custom_call.1} parent=11 // pred_check_branch
          %162 = sbr.rel (%p160) target = $region16
        $region15: #{tpu_custom_call.1} parent=11 // pred_region
          %s163 = smul.u32 64, %s27
          %s164 = smul.u32 2, %s28
          %s166 = ssub.s32 8192, 8192
          %167 = vsyncadd [#allocation4], %s166
          %s168 = smul.addr %s163, 2
          %s169 = sadd.s32 %s164, %s168
          %s170 = smul.addr %s169, 64
          %s171 = scalar_lea.hbm %s0, %s170
          %s172 = sshll.u32 [#allocation3], 4
          %s173 = int_to_ptr.vmem [resolvable:$true] %s172
          %178 = dma.hbm_to_vmem [thread:$0]  %s171, 8192, %s173, [#allocation4], 128, 128, 8
        $region16: #{tpu_custom_call.1} parent=11 // pred_fallthru
          _
      $region12: #{tpu_custom_call.1} parent=5 // pred_fallthru
        _
      %p179 = scmp.lt.s32.totalorder %s16, 3
      // Predicated region
      $region17: #{tpu_custom_call.1} parent=5 // pred_check
        %p180 = pneg %p179
      $region18: #{tpu_custom_call.1} parent=5 // pred_check_branch
        %182 = sbr.rel (%p180) target = $region20
      $region19: #{tpu_custom_call.1} parent=5 // pred_region
        // Predicated region
        $region21: #{tpu_custom_call.1} parent=19 // pred_check
          %p183 = pneg %p85
        $region22: #{tpu_custom_call.1} parent=19 // pred_check_branch
          %185 = sbr.rel (%p183) target = $region24
        $region23: #{tpu_custom_call.1} parent=19 // pred_region
          %s186 = sand.u32 %s75, 1
          %s187 = scalar_lea.sflag [#allocation7], %s186
          %s188 = sand.u32 %s75, 1
          %s189 = smul.addr %s188, 256
          %s190 = scalar_lea.vmem [#allocation6], %s189
          %s191 = smul.u32 32, %s25
          %s192 = smul.u32 2, %s23
          %s194 = ssub.s32 4096, 4096
          %195 = vsyncadd %s187, %s194
          %s196 = smul.addr %s191, 6
          %s197 = sadd.s32 %s192, %s196
          %s198 = smul.addr %s197, 64
          %s199 = scalar_lea.hbm %s1, %s198
          %s200 = sshll.u32 %s190, 4
          %s201 = int_to_ptr.vmem [resolvable:$true] %s200
          %206 = dma.hbm_to_vmem [thread:$0]  %s199, 4096, %s201, %s187, 384, 128, 8
        $region24: #{tpu_custom_call.1} parent=19 // pred_fallthru
          _
        // Predicated region
        $region25: #{tpu_custom_call.1} parent=19 // pred_check
          %p207 = pneg %p111
        $region26: #{tpu_custom_call.1} parent=19 // pred_check_branch
          %209 = sbr.rel (%p207) target = $region28
        $region27: #{tpu_custom_call.1} parent=19 // pred_region
          %s210 = smul.u32 2, %s23
          %p211 = scmp.lt.s32.totalorder %s210, 5
          %s212 = scalar_select %p211, %s210, 5
          %s213 = scalar_lea.vmem %s2, %s212
          %s214 = smul.u32 2, %s23
        $region28: #{tpu_custom_call.1} parent=19 // pred_fallthru
          _
      $region20: #{tpu_custom_call.1} parent=5 // pred_fallthru
        _
      %p215 = scmp.le.s32.totalorder 1, %s16
      %p216 = scmp.lt.s32.totalorder %s16, 4
      %p217 = pnand %p215, %p216
      %p218 = pneg %p217
      // Predicated region
      $region29: #{tpu_custom_call.1} parent=5 // pred_check
        _
      $region30: #{tpu_custom_call.1} parent=5 // pred_check_branch
        %220 = sbr.rel (%p217) target = $region32
      $region31: #{tpu_custom_call.1} parent=5 // pred_region
        %s221 = ssub.s32 %s16, 1
        // Predicated region
        $region33: #{tpu_custom_call.1} parent=31 // pred_check
          %p222 = pneg %p63
        $region34: #{tpu_custom_call.1} parent=31 // pred_check_branch
          %224 = sbr.rel (%p222) target = $region36
        $region35: #{tpu_custom_call.1} parent=31 // pred_region
          %225 = dma.done [#allocation4], 8192
        $region36: #{tpu_custom_call.1} parent=31 // pred_fallthru
          _
        %s226 = sand.u32 %s78, 1
        %s227 = scalar_lea.sflag [#allocation7], %s226
        %s228 = sand.u32 %s78, 1
        %s229 = smul.addr %s228, 256
        %s230 = scalar_lea.vmem [#allocation6], %s229
        // Predicated region
        $region37: #{tpu_custom_call.1} parent=31 // pred_check
          %p231 = pneg %p91
        $region38: #{tpu_custom_call.1} parent=31 // pred_check_branch
          %233 = sbr.rel (%p231) target = $region40
        $region39: #{tpu_custom_call.1} parent=31 // pred_region
          %234 = dma.done %s227, 4096
        $region40: #{tpu_custom_call.1} parent=31 // pred_fallthru
          _
        %p235 = pneg %p63
        %p236 = pneg %p60
        %s237 = sand.u32 %s78, 1
        %s238 = scalar_lea.sflag [#allocation7], %s237
        %s239 = sand.u32 %s78, 1
        %s240 = smul.addr %s239, 256
        %s241 = scalar_lea.vmem [#allocation6], %s240
        %p242 = pneg %p91
        %p243 = pneg %p88
        %s244 = smul.u32 2, %s26
        %p245 = scmp.lt.s32.totalorder %s244, 5
        %s246 = scalar_select %p245, %s244, 5
        %s247 = scalar_lea.vmem %s2, %s246
        %p248 = pneg %p117
        %p249 = pneg %p114
        %p250 = pneg %p145
        %p251 = pneg %p142
        %s252 = sand.u32 %s132, 1
        %s253 = scalar_lea.sflag [#allocation5], %s252
        %s254 = sand.u32 %s132, 1
        %s255 = smul.addr %s254, 512
        %s256 = scalar_lea.vmem [#allocation8], %s255
        %s257 = smul.u32 64, %s27
        %s258 = smul.u32 2, %s28
        %s259 = smul.u32 32, %s28
        %s260 = smul.u32 2, %s26
        %s261 = smul.u32 2, %s26
        %p262 = scmp.lt.s32.totalorder %s261, 5
        %s263 = scalar_select %p262, %s261, 5
        %s264 = scalar_lea.vmem %s2, %s263
        %s265 = smul.u32 2, %s26
        %s266 = smul.u32 64, %s27
        %s267 = smul.u32 2, %s26
        %p268 = scmp.eq.s32.totalorder %s28, 0
        // Predicated region
        $region41: #{tpu_custom_call.1} parent=31 // pred_check
          %p269 = pneg %p268
        $region42: #{tpu_custom_call.1} parent=31 // pred_check_branch
          %271 = sbr.rel (%p269) target = $region44
        $region43: #{tpu_custom_call.1} parent=31 // pred_region
          %272 = vst [vmem:[#allocation2] sm:$0xff] 0.0
          %273 = vst [vmem:[#allocation2 + $0x8] sm:$0xff] 0.0
          %274 = vst [vmem:[#allocation2 + $0x10] sm:$0xff] 0.0
          %275 = vst [vmem:[#allocation2 + $0x18] sm:$0xff] 0.0
          %276 = vst [vmem:[#allocation2 + $0x20] sm:$0xff] 0.0
          %277 = vst [vmem:[#allocation2 + $0x28] sm:$0xff] 0.0
          %278 = vst [vmem:[#allocation2 + $0x30] sm:$0xff] 0.0
          %279 = vst [vmem:[#allocation2 + $0x38] sm:$0xff] 0.0
          %280 = vst [vmem:[#allocation2 + $0x40] sm:$0xff] 0.0
          %281 = vst [vmem:[#allocation2 + $0x48] sm:$0xff] 0.0
          %282 = vst [vmem:[#allocation2 + $0x50] sm:$0xff] 0.0
          %283 = vst [vmem:[#allocation2 + $0x58] sm:$0xff] 0.0
          %284 = vst [vmem:[#allocation2 + $0x60] sm:$0xff] 0.0
          %285 = vst [vmem:[#allocation2 + $0x68] sm:$0xff] 0.0
          %286 = vst [vmem:[#allocation2 + $0x70] sm:$0xff] 0.0
          %287 = vst [vmem:[#allocation2 + $0x78] sm:$0xff] 0.0
          %288 = vst [vmem:[#allocation2 + $0x80] sm:$0xff] 0.0
          %289 = vst [vmem:[#allocation2 + $0x88] sm:$0xff] 0.0
          %290 = vst [vmem:[#allocation2 + $0x90] sm:$0xff] 0.0
          %291 = vst [vmem:[#allocation2 + $0x98] sm:$0xff] 0.0
          %292 = vst [vmem:[#allocation2 + $0xa0] sm:$0xff] 0.0
          %293 = vst [vmem:[#allocation2 + $0xa8] sm:$0xff] 0.0
          %294 = vst [vmem:[#allocation2 + $0xb0] sm:$0xff] 0.0
          %295 = vst [vmem:[#allocation2 + $0xb8] sm:$0xff] 0.0
          %296 = vst [vmem:[#allocation2 + $0xc0] sm:$0xff] 0.0
          %297 = vst [vmem:[#allocation2 + $0xc8] sm:$0xff] 0.0
          %298 = vst [vmem:[#allocation2 + $0xd0] sm:$0xff] 0.0
          %299 = vst [vmem:[#allocation2 + $0xd8] sm:$0xff] 0.0
          %300 = vst [vmem:[#allocation2 + $0xe0] sm:$0xff] 0.0
          %301 = vst [vmem:[#allocation2 + $0xe8] sm:$0xff] 0.0
          %302 = vst [vmem:[#allocation2 + $0xf0] sm:$0xff] 0.0
          %303 = vst [vmem:[#allocation2 + $0xf8] sm:$0xff] 0.0
          %304 = vst [vmem:[#allocation2 + $0x100] sm:$0xff] 0.0
          %305 = vst [vmem:[#allocation2 + $0x108] sm:$0xff] 0.0
          %306 = vst [vmem:[#allocation2 + $0x110] sm:$0xff] 0.0
          %307 = vst [vmem:[#allocation2 + $0x118] sm:$0xff] 0.0
          %308 = vst [vmem:[#allocation2 + $0x120] sm:$0xff] 0.0
          %309 = vst [vmem:[#allocation2 + $0x128] sm:$0xff] 0.0
          %310 = vst [vmem:[#allocation2 + $0x130] sm:$0xff] 0.0
          %311 = vst [vmem:[#allocation2 + $0x138] sm:$0xff] 0.0
          %312 = vst [vmem:[#allocation2 + $0x140] sm:$0xff] 0.0
          %313 = vst [vmem:[#allocation2 + $0x148] sm:$0xff] 0.0
          %314 = vst [vmem:[#allocation2 + $0x150] sm:$0xff] 0.0
          %315 = vst [vmem:[#allocation2 + $0x158] sm:$0xff] 0.0
          %316 = vst [vmem:[#allocation2 + $0x160] sm:$0xff] 0.0
          %317 = vst [vmem:[#allocation2 + $0x168] sm:$0xff] 0.0
          %318 = vst [vmem:[#allocation2 + $0x170] sm:$0xff] 0.0
          %319 = vst [vmem:[#allocation2 + $0x178] sm:$0xff] 0.0
          %320 = vst [vmem:[#allocation2 + $0x180] sm:$0xff] 0.0
          %321 = vst [vmem:[#allocation2 + $0x188] sm:$0xff] 0.0
          %322 = vst [vmem:[#allocation2 + $0x190] sm:$0xff] 0.0
          %323 = vst [vmem:[#allocation2 + $0x198] sm:$0xff] 0.0
          %324 = vst [vmem:[#allocation2 + $0x1a0] sm:$0xff] 0.0
          %325 = vst [vmem:[#allocation2 + $0x1a8] sm:$0xff] 0.0
          %326 = vst [vmem:[#allocation2 + $0x1b0] sm:$0xff] 0.0
          %327 = vst [vmem:[#allocation2 + $0x1b8] sm:$0xff] 0.0
          %328 = vst [vmem:[#allocation2 + $0x1c0] sm:$0xff] 0.0
          %329 = vst [vmem:[#allocation2 + $0x1c8] sm:$0xff] 0.0
          %330 = vst [vmem:[#allocation2 + $0x1d0] sm:$0xff] 0.0
          %331 = vst [vmem:[#allocation2 + $0x1d8] sm:$0xff] 0.0
          %332 = vst [vmem:[#allocation2 + $0x1e0] sm:$0xff] 0.0
          %333 = vst [vmem:[#allocation2 + $0x1e8] sm:$0xff] 0.0
          %334 = vst [vmem:[#allocation2 + $0x1f0] sm:$0xff] 0.0
          %335 = vst [vmem:[#allocation2 + $0x1f8] sm:$0xff] 0.0
          %336 = vst [vmem:[#allocation2 + $0x200] sm:$0xff] 0.0
          %337 = vst [vmem:[#allocation2 + $0x208] sm:$0xff] 0.0
          %338 = vst [vmem:[#allocation2 + $0x210] sm:$0xff] 0.0
          %339 = vst [vmem:[#allocation2 + $0x218] sm:$0xff] 0.0
          %340 = vst [vmem:[#allocation2 + $0x220] sm:$0xff] 0.0
          %341 = vst [vmem:[#allocation2 + $0x228] sm:$0xff] 0.0
          %342 = vst [vmem:[#allocation2 + $0x230] sm:$0xff] 0.0
          %343 = vst [vmem:[#allocation2 + $0x238] sm:$0xff] 0.0
          %344 = vst [vmem:[#allocation2 + $0x240] sm:$0xff] 0.0
          %345 = vst [vmem:[#allocation2 + $0x248] sm:$0xff] 0.0
          %346 = vst [vmem:[#allocation2 + $0x250] sm:$0xff] 0.0
          %347 = vst [vmem:[#allocation2 + $0x258] sm:$0xff] 0.0
          %348 = vst [vmem:[#allocation2 + $0x260] sm:$0xff] 0.0
          %349 = vst [vmem:[#allocation2 + $0x268] sm:$0xff] 0.0
          %350 = vst [vmem:[#allocation2 + $0x270] sm:$0xff] 0.0
          %351 = vst [vmem:[#allocation2 + $0x278] sm:$0xff] 0.0
          %352 = vst [vmem:[#allocation2 + $0x280] sm:$0xff] 0.0
          %353 = vst [vmem:[#allocation2 + $0x288] sm:$0xff] 0.0
          %354 = vst [vmem:[#allocation2 + $0x290] sm:$0xff] 0.0
          %355 = vst [vmem:[#allocation2 + $0x298] sm:$0xff] 0.0
          %356 = vst [vmem:[#allocation2 + $0x2a0] sm:$0xff] 0.0
          %357 = vst [vmem:[#allocation2 + $0x2a8] sm:$0xff] 0.0
          %358 = vst [vmem:[#allocation2 + $0x2b0] sm:$0xff] 0.0
          %359 = vst [vmem:[#allocation2 + $0x2b8] sm:$0xff] 0.0
          %360 = vst [vmem:[#allocation2 + $0x2c0] sm:$0xff] 0.0
          %361 = vst [vmem:[#allocation2 + $0x2c8] sm:$0xff] 0.0
          %362 = vst [vmem:[#allocation2 + $0x2d0] sm:$0xff] 0.0
          %363 = vst [vmem:[#allocation2 + $0x2d8] sm:$0xff] 0.0
          %364 = vst [vmem:[#allocation2 + $0x2e0] sm:$0xff] 0.0
          %365 = vst [vmem:[#allocation2 + $0x2e8] sm:$0xff] 0.0
          %366 = vst [vmem:[#allocation2 + $0x2f0] sm:$0xff] 0.0
          %367 = vst [vmem:[#allocation2 + $0x2f8] sm:$0xff] 0.0
          %368 = vst [vmem:[#allocation2 + $0x300] sm:$0xff] 0.0
          %369 = vst [vmem:[#allocation2 + $0x308] sm:$0xff] 0.0
          %370 = vst [vmem:[#allocation2 + $0x310] sm:$0xff] 0.0
          %371 = vst [vmem:[#allocation2 + $0x318] sm:$0xff] 0.0
          %372 = vst [vmem:[#allocation2 + $0x320] sm:$0xff] 0.0
          %373 = vst [vmem:[#allocation2 + $0x328] sm:$0xff] 0.0
          %374 = vst [vmem:[#allocation2 + $0x330] sm:$0xff] 0.0
          %375 = vst [vmem:[#allocation2 + $0x338] sm:$0xff] 0.0
          %376 = vst [vmem:[#allocation2 + $0x340] sm:$0xff] 0.0
          %377 = vst [vmem:[#allocation2 + $0x348] sm:$0xff] 0.0
          %378 = vst [vmem:[#allocation2 + $0x350] sm:$0xff] 0.0
          %379 = vst [vmem:[#allocation2 + $0x358] sm:$0xff] 0.0
          %380 = vst [vmem:[#allocation2 + $0x360] sm:$0xff] 0.0
          %381 = vst [vmem:[#allocation2 + $0x368] sm:$0xff] 0.0
          %382 = vst [vmem:[#allocation2 + $0x370] sm:$0xff] 0.0
          %383 = vst [vmem:[#allocation2 + $0x378] sm:$0xff] 0.0
          %384 = vst [vmem:[#allocation2 + $0x380] sm:$0xff] 0.0
          %385 = vst [vmem:[#allocation2 + $0x388] sm:$0xff] 0.0
          %386 = vst [vmem:[#allocation2 + $0x390] sm:$0xff] 0.0
          %387 = vst [vmem:[#allocation2 + $0x398] sm:$0xff] 0.0
          %388 = vst [vmem:[#allocation2 + $0x3a0] sm:$0xff] 0.0
          %389 = vst [vmem:[#allocation2 + $0x3a8] sm:$0xff] 0.0
          %390 = vst [vmem:[#allocation2 + $0x3b0] sm:$0xff] 0.0
          %391 = vst [vmem:[#allocation2 + $0x3b8] sm:$0xff] 0.0
          %392 = vst [vmem:[#allocation2 + $0x3c0] sm:$0xff] 0.0
          %393 = vst [vmem:[#allocation2 + $0x3c8] sm:$0xff] 0.0
          %394 = vst [vmem:[#allocation2 + $0x3d0] sm:$0xff] 0.0
          %395 = vst [vmem:[#allocation2 + $0x3d8] sm:$0xff] 0.0
          %396 = vst [vmem:[#allocation2 + $0x3e0] sm:$0xff] 0.0
          %397 = vst [vmem:[#allocation2 + $0x3e8] sm:$0xff] 0.0
          %398 = vst [vmem:[#allocation2 + $0x3f0] sm:$0xff] 0.0
          %399 = vst [vmem:[#allocation2 + $0x3f8] sm:$0xff] 0.0
        $region44: #{tpu_custom_call.1} parent=31 // pred_fallthru
          _
        %v400 = vld [vmem:[#allocation2] sm:$0xff]
        %v401 = vld [vmem:[#allocation2 + $0x8] sm:$0xff]
        %v402 = vld [vmem:[#allocation2 + $0x10] sm:$0xff]
        %v403 = vld [vmem:[#allocation2 + $0x18] sm:$0xff]
        %v404 = vld [vmem:[#allocation2 + $0x20] sm:$0xff]
        %v405 = vld [vmem:[#allocation2 + $0x28] sm:$0xff]
        %v406 = vld [vmem:[#allocation2 + $0x30] sm:$0xff]
        %v407 = vld [vmem:[#allocation2 + $0x38] sm:$0xff]
        %v408 = vld [vmem:[#allocation2 + $0x40] sm:$0xff]
        %v409 = vld [vmem:[#allocation2 + $0x48] sm:$0xff]
        %v410 = vld [vmem:[#allocation2 + $0x50] sm:$0xff]
        %v411 = vld [vmem:[#allocation2 + $0x58] sm:$0xff]
        %v412 = vld [vmem:[#allocation2 + $0x60] sm:$0xff]
        %v413 = vld [vmem:[#allocation2 + $0x68] sm:$0xff]
        %v414 = vld [vmem:[#allocation2 + $0x70] sm:$0xff]
        %v415 = vld [vmem:[#allocation2 + $0x78] sm:$0xff]
        %v416 = vld [vmem:[#allocation2 + $0x80] sm:$0xff]
        %v417 = vld [vmem:[#allocation2 + $0x88] sm:$0xff]
        %v418 = vld [vmem:[#allocation2 + $0x90] sm:$0xff]
        %v419 = vld [vmem:[#allocation2 + $0x98] sm:$0xff]
        %v420 = vld [vmem:[#allocation2 + $0xa0] sm:$0xff]
        %v421 = vld [vmem:[#allocation2 + $0xa8] sm:$0xff]
        %v422 = vld [vmem:[#allocation2 + $0xb0] sm:$0xff]
        %v423 = vld [vmem:[#allocation2 + $0xb8] sm:$0xff]
        %v424 = vld [vmem:[#allocation2 + $0xc0] sm:$0xff]
        %v425 = vld [vmem:[#allocation2 + $0xc8] sm:$0xff]
        %v426 = vld [vmem:[#allocation2 + $0xd0] sm:$0xff]
        %v427 = vld [vmem:[#allocation2 + $0xd8] sm:$0xff]
        %v428 = vld [vmem:[#allocation2 + $0xe0] sm:$0xff]
        %v429 = vld [vmem:[#allocation2 + $0xe8] sm:$0xff]
        %v430 = vld [vmem:[#allocation2 + $0xf0] sm:$0xff]
        %v431 = vld [vmem:[#allocation2 + $0xf8] sm:$0xff]
        %v432 = vld [vmem:[#allocation2 + $0x100] sm:$0xff]
        %v433 = vld [vmem:[#allocation2 + $0x108] sm:$0xff]
        %v434 = vld [vmem:[#allocation2 + $0x110] sm:$0xff]
        %v435 = vld [vmem:[#allocation2 + $0x118] sm:$0xff]
        %v436 = vld [vmem:[#allocation2 + $0x120] sm:$0xff]
        %v437 = vld [vmem:[#allocation2 + $0x128] sm:$0xff]
        %v438 = vld [vmem:[#allocation2 + $0x130] sm:$0xff]
        %v439 = vld [vmem:[#allocation2 + $0x138] sm:$0xff]
        %v440 = vld [vmem:[#allocation2 + $0x140] sm:$0xff]
        %v441 = vld [vmem:[#allocation2 + $0x148] sm:$0xff]
        %v442 = vld [vmem:[#allocation2 + $0x150] sm:$0xff]
        %v443 = vld [vmem:[#allocation2 + $0x158] sm:$0xff]
        %v444 = vld [vmem:[#allocation2 + $0x160] sm:$0xff]
        %v445 = vld [vmem:[#allocation2 + $0x168] sm:$0xff]
        %v446 = vld [vmem:[#allocation2 + $0x170] sm:$0xff]
        %v447 = vld [vmem:[#allocation2 + $0x178] sm:$0xff]
        %v448 = vld [vmem:[#allocation2 + $0x180] sm:$0xff]
        %v449 = vld [vmem:[#allocation2 + $0x188] sm:$0xff]
        %v450 = vld [vmem:[#allocation2 + $0x190] sm:$0xff]
        %v451 = vld [vmem:[#allocation2 + $0x198] sm:$0xff]
        %v452 = vld [vmem:[#allocation2 + $0x1a0] sm:$0xff]
        %v453 = vld [vmem:[#allocation2 + $0x1a8] sm:$0xff]
        %v454 = vld [vmem:[#allocation2 + $0x1b0] sm:$0xff]
        %v455 = vld [vmem:[#allocation2 + $0x1b8] sm:$0xff]
        %v456 = vld [vmem:[#allocation2 + $0x1c0] sm:$0xff]
        %v457 = vld [vmem:[#allocation2 + $0x1c8] sm:$0xff]
        %v458 = vld [vmem:[#allocation2 + $0x1d0] sm:$0xff]
        %v459 = vld [vmem:[#allocation2 + $0x1d8] sm:$0xff]
        %v460 = vld [vmem:[#allocation2 + $0x1e0] sm:$0xff]
        %v461 = vld [vmem:[#allocation2 + $0x1e8] sm:$0xff]
        %v462 = vld [vmem:[#allocation2 + $0x1f0] sm:$0xff]
        %v463 = vld [vmem:[#allocation2 + $0x1f8] sm:$0xff]
        %v464 = vld [vmem:[#allocation2 + $0x200] sm:$0xff]
        %v465 = vld [vmem:[#allocation2 + $0x208] sm:$0xff]
        %v466 = vld [vmem:[#allocation2 + $0x210] sm:$0xff]
        %v467 = vld [vmem:[#allocation2 + $0x218] sm:$0xff]
        %v468 = vld [vmem:[#allocation2 + $0x220] sm:$0xff]
        %v469 = vld [vmem:[#allocation2 + $0x228] sm:$0xff]
        %v470 = vld [vmem:[#allocation2 + $0x230] sm:$0xff]
        %v471 = vld [vmem:[#allocation2 + $0x238] sm:$0xff]
        %v472 = vld [vmem:[#allocation2 + $0x240] sm:$0xff]
        %v473 = vld [vmem:[#allocation2 + $0x248] sm:$0xff]
        %v474 = vld [vmem:[#allocation2 + $0x250] sm:$0xff]
        %v475 = vld [vmem:[#allocation2 + $0x258] sm:$0xff]
        %v476 = vld [vmem:[#allocation2 + $0x260] sm:$0xff]
        %v477 = vld [vmem:[#allocation2 + $0x268] sm:$0xff]
        %v478 = vld [vmem:[#allocation2 + $0x270] sm:$0xff]
        %v479 = vld [vmem:[#allocation2 + $0x278] sm:$0xff]
        %v480 = vld [vmem:[#allocation2 + $0x280] sm:$0xff]
        %v481 = vld [vmem:[#allocation2 + $0x288] sm:$0xff]
        %v482 = vld [vmem:[#allocation2 + $0x290] sm:$0xff]
        %v483 = vld [vmem:[#allocation2 + $0x298] sm:$0xff]
        %v484 = vld [vmem:[#allocation2 + $0x2a0] sm:$0xff]
        %v485 = vld [vmem:[#allocation2 + $0x2a8] sm:$0xff]
        %v486 = vld [vmem:[#allocation2 + $0x2b0] sm:$0xff]
        %v487 = vld [vmem:[#allocation2 + $0x2b8] sm:$0xff]
        %v488 = vld [vmem:[#allocation2 + $0x2c0] sm:$0xff]
        %v489 = vld [vmem:[#allocation2 + $0x2c8] sm:$0xff]
        %v490 = vld [vmem:[#allocation2 + $0x2d0] sm:$0xff]
        %v491 = vld [vmem:[#allocation2 + $0x2d8] sm:$0xff]
        %v492 = vld [vmem:[#allocation2 + $0x2e0] sm:$0xff]
        %v493 = vld [vmem:[#allocation2 + $0x2e8] sm:$0xff]
        %v494 = vld [vmem:[#allocation2 + $0x2f0] sm:$0xff]
        %v495 = vld [vmem:[#allocation2 + $0x2f8] sm:$0xff]
        %v496 = vld [vmem:[#allocation2 + $0x300] sm:$0xff]
        %v497 = vld [vmem:[#allocation2 + $0x308] sm:$0xff]
        %v498 = vld [vmem:[#allocation2 + $0x310] sm:$0xff]
        %v499 = vld [vmem:[#allocation2 + $0x318] sm:$0xff]
        %v500 = vld [vmem:[#allocation2 + $0x320] sm:$0xff]
        %v501 = vld [vmem:[#allocation2 + $0x328] sm:$0xff]
        %v502 = vld [vmem:[#allocation2 + $0x330] sm:$0xff]
        %v503 = vld [vmem:[#allocation2 + $0x338] sm:$0xff]
        %v504 = vld [vmem:[#allocation2 + $0x340] sm:$0xff]
        %v505 = vld [vmem:[#allocation2 + $0x348] sm:$0xff]
        %v506 = vld [vmem:[#allocation2 + $0x350] sm:$0xff]
        %v507 = vld [vmem:[#allocation2 + $0x358] sm:$0xff]
        %v508 = vld [vmem:[#allocation2 + $0x360] sm:$0xff]
        %v509 = vld [vmem:[#allocation2 + $0x368] sm:$0xff]
        %v510 = vld [vmem:[#allocation2 + $0x370] sm:$0xff]
        %v511 = vld [vmem:[#allocation2 + $0x378] sm:$0xff]
        %v512 = vld [vmem:[#allocation2 + $0x380] sm:$0xff]
        %v513 = vld [vmem:[#allocation2 + $0x388] sm:$0xff]
        %v514 = vld [vmem:[#allocation2 + $0x390] sm:$0xff]
        %v515 = vld [vmem:[#allocation2 + $0x398] sm:$0xff]
        %v516 = vld [vmem:[#allocation2 + $0x3a0] sm:$0xff]
        %v517 = vld [vmem:[#allocation2 + $0x3a8] sm:$0xff]
        %v518 = vld [vmem:[#allocation2 + $0x3b0] sm:$0xff]
        %v519 = vld [vmem:[#allocation2 + $0x3b8] sm:$0xff]
        %v520 = vld [vmem:[#allocation2 + $0x3c0] sm:$0xff]
        %v521 = vld [vmem:[#allocation2 + $0x3c8] sm:$0xff]
        %v522 = vld [vmem:[#allocation2 + $0x3d0] sm:$0xff]
        %v523 = vld [vmem:[#allocation2 + $0x3d8] sm:$0xff]
        %v524 = vld [vmem:[#allocation2 + $0x3e0] sm:$0xff]
        %v525 = vld [vmem:[#allocation2 + $0x3e8] sm:$0xff]
        %v526 = vld [vmem:[#allocation2 + $0x3f0] sm:$0xff]
        %v527 = vld [vmem:[#allocation2 + $0x3f8] sm:$0xff]
        %v528 = vld [vmem:[#allocation3] sm:$0xff]
        %v529 = vld [vmem:[#allocation3 + $0x8] sm:$0xff]
        %v530 = vld [vmem:[#allocation3 + $0x10] sm:$0xff]
        %v531 = vld [vmem:[#allocation3 + $0x18] sm:$0xff]
        %v532 = vld [vmem:[#allocation3 + $0x20] sm:$0xff]
        %v533 = vld [vmem:[#allocation3 + $0x28] sm:$0xff]
        %v534 = vld [vmem:[#allocation3 + $0x30] sm:$0xff]
        %v535 = vld [vmem:[#allocation3 + $0x38] sm:$0xff]
        %v536 = vld [vmem:[#allocation3 + $0x40] sm:$0xff]
        %v537 = vld [vmem:[#allocation3 + $0x48] sm:$0xff]
        %v538 = vld [vmem:[#allocation3 + $0x50] sm:$0xff]
        %v539 = vld [vmem:[#allocation3 + $0x58] sm:$0xff]
        %v540 = vld [vmem:[#allocation3 + $0x60] sm:$0xff]
        %v541 = vld [vmem:[#allocation3 + $0x68] sm:$0xff]
        %v542 = vld [vmem:[#allocation3 + $0x70] sm:$0xff]
        %v543 = vld [vmem:[#allocation3 + $0x78] sm:$0xff]
        %v544 = vld [vmem:[#allocation3 + $0x80] sm:$0xff]
        %v545 = vld [vmem:[#allocation3 + $0x88] sm:$0xff]
        %v546 = vld [vmem:[#allocation3 + $0x90] sm:$0xff]
        %v547 = vld [vmem:[#allocation3 + $0x98] sm:$0xff]
        %v548 = vld [vmem:[#allocation3 + $0xa0] sm:$0xff]
        %v549 = vld [vmem:[#allocation3 + $0xa8] sm:$0xff]
        %v550 = vld [vmem:[#allocation3 + $0xb0] sm:$0xff]
        %v551 = vld [vmem:[#allocation3 + $0xb8] sm:$0xff]
        %v552 = vld [vmem:[#allocation3 + $0xc0] sm:$0xff]
        %v553 = vld [vmem:[#allocation3 + $0xc8] sm:$0xff]
        %v554 = vld [vmem:[#allocation3 + $0xd0] sm:$0xff]
        %v555 = vld [vmem:[#allocation3 + $0xd8] sm:$0xff]
        %v556 = vld [vmem:[#allocation3 + $0xe0] sm:$0xff]
        %v557 = vld [vmem:[#allocation3 + $0xe8] sm:$0xff]
        %v558 = vld [vmem:[#allocation3 + $0xf0] sm:$0xff]
        %v559 = vld [vmem:[#allocation3 + $0xf8] sm:$0xff]
        %v560 = vld [vmem:[#allocation3 + $0x100] sm:$0xff]
        %v561 = vld [vmem:[#allocation3 + $0x108] sm:$0xff]
        %v562 = vld [vmem:[#allocation3 + $0x110] sm:$0xff]
        %v563 = vld [vmem:[#allocation3 + $0x118] sm:$0xff]
        %v564 = vld [vmem:[#allocation3 + $0x120] sm:$0xff]
        %v565 = vld [vmem:[#allocation3 + $0x128] sm:$0xff]
        %v566 = vld [vmem:[#allocation3 + $0x130] sm:$0xff]
        %v567 = vld [vmem:[#allocation3 + $0x138] sm:$0xff]
        %v568 = vld [vmem:[#allocation3 + $0x140] sm:$0xff]
        %v569 = vld [vmem:[#allocation3 + $0x148] sm:$0xff]
        %v570 = vld [vmem:[#allocation3 + $0x150] sm:$0xff]
        %v571 = vld [vmem:[#allocation3 + $0x158] sm:$0xff]
        %v572 = vld [vmem:[#allocation3 + $0x160] sm:$0xff]
        %v573 = vld [vmem:[#allocation3 + $0x168] sm:$0xff]
        %v574 = vld [vmem:[#allocation3 + $0x170] sm:$0xff]
        %v575 = vld [vmem:[#allocation3 + $0x178] sm:$0xff]
        %v576 = vld [vmem:[#allocation3 + $0x180] sm:$0xff]
        %v577 = vld [vmem:[#allocation3 + $0x188] sm:$0xff]
        %v578 = vld [vmem:[#allocation3 + $0x190] sm:$0xff]
        %v579 = vld [vmem:[#allocation3 + $0x198] sm:$0xff]
        %v580 = vld [vmem:[#allocation3 + $0x1a0] sm:$0xff]
        %v581 = vld [vmem:[#allocation3 + $0x1a8] sm:$0xff]
        %v582 = vld [vmem:[#allocation3 + $0x1b0] sm:$0xff]
        %v583 = vld [vmem:[#allocation3 + $0x1b8] sm:$0xff]
        %v584 = vld [vmem:[#allocation3 + $0x1c0] sm:$0xff]
        %v585 = vld [vmem:[#allocation3 + $0x1c8] sm:$0xff]
        %v586 = vld [vmem:[#allocation3 + $0x1d0] sm:$0xff]
        %v587 = vld [vmem:[#allocation3 + $0x1d8] sm:$0xff]
        %v588 = vld [vmem:[#allocation3 + $0x1e0] sm:$0xff]
        %v589 = vld [vmem:[#allocation3 + $0x1e8] sm:$0xff]
        %v590 = vld [vmem:[#allocation3 + $0x1f0] sm:$0xff]
        %v591 = vld [vmem:[#allocation3 + $0x1f8] sm:$0xff]
        %v592 = vld [vmem:[%s230] sm:$0xff]
        %v593 = vld [vmem:[%s230 + $0x8] sm:$0xff]
        %v594 = vld [vmem:[%s230 + $0x10] sm:$0xff]
        %v595 = vld [vmem:[%s230 + $0x18] sm:$0xff]
        %v596 = vld [vmem:[%s230 + $0x20] sm:$0xff]
        %v597 = vld [vmem:[%s230 + $0x28] sm:$0xff]
        %v598 = vld [vmem:[%s230 + $0x30] sm:$0xff]
        %v599 = vld [vmem:[%s230 + $0x38] sm:$0xff]
        %v600 = vld [vmem:[%s230 + $0x40] sm:$0xff]
        %v601 = vld [vmem:[%s230 + $0x48] sm:$0xff]
        %v602 = vld [vmem:[%s230 + $0x50] sm:$0xff]
        %v603 = vld [vmem:[%s230 + $0x58] sm:$0xff]
        %v604 = vld [vmem:[%s230 + $0x60] sm:$0xff]
        %v605 = vld [vmem:[%s230 + $0x68] sm:$0xff]
        %v606 = vld [vmem:[%s230 + $0x70] sm:$0xff]
        %v607 = vld [vmem:[%s230 + $0x78] sm:$0xff]
        %v608 = vld [vmem:[%s230 + $0x80] sm:$0xff]
        %v609 = vld [vmem:[%s230 + $0x88] sm:$0xff]
        %v610 = vld [vmem:[%s230 + $0x90] sm:$0xff]
        %v611 = vld [vmem:[%s230 + $0x98] sm:$0xff]
        %v612 = vld [vmem:[%s230 + $0xa0] sm:$0xff]
        %v613 = vld [vmem:[%s230 + $0xa8] sm:$0xff]
        %v614 = vld [vmem:[%s230 + $0xb0] sm:$0xff]
        %v615 = vld [vmem:[%s230 + $0xb8] sm:$0xff]
        %v616 = vld [vmem:[%s230 + $0xc0] sm:$0xff]
        %v617 = vld [vmem:[%s230 + $0xc8] sm:$0xff]
        %v618 = vld [vmem:[%s230 + $0xd0] sm:$0xff]
        %v619 = vld [vmem:[%s230 + $0xd8] sm:$0xff]
        %v620 = vld [vmem:[%s230 + $0xe0] sm:$0xff]
        %v621 = vld [vmem:[%s230 + $0xe8] sm:$0xff]
        %v622 = vld [vmem:[%s230 + $0xf0] sm:$0xff]
        %v623 = vld [vmem:[%s230 + $0xf8] sm:$0xff]
        %v688 = vunpack.c.l.b16 %v528
        %v689 = vunpack.c.h.b16 %v528
        %v690 = vunpack.c.l.b16 %v529
        %v691 = vunpack.c.h.b16 %v529
        %v692 = vunpack.c.l.b16 %v530
        %v693 = vunpack.c.h.b16 %v530
        %v694 = vunpack.c.l.b16 %v531
        %v695 = vunpack.c.h.b16 %v531
        %v696 = vunpack.c.l.b16 %v532
        %v697 = vunpack.c.h.b16 %v532
        %v698 = vunpack.c.l.b16 %v533
        %v699 = vunpack.c.h.b16 %v533
        %v700 = vunpack.c.l.b16 %v534
        %v701 = vunpack.c.h.b16 %v534
        %v702 = vunpack.c.l.b16 %v535
        %v703 = vunpack.c.h.b16 %v535
        %v704 = vunpack.c.l.b16 %v536
        %v705 = vunpack.c.h.b16 %v536
        %v706 = vunpack.c.l.b16 %v537
        %v707 = vunpack.c.h.b16 %v537
        %v708 = vunpack.c.l.b16 %v538
        %v709 = vunpack.c.h.b16 %v538
        %v710 = vunpack.c.l.b16 %v539
        %v711 = vunpack.c.h.b16 %v539
        %v712 = vunpack.c.l.b16 %v540
        %v713 = vunpack.c.h.b16 %v540
        %v714 = vunpack.c.l.b16 %v541
        %v715 = vunpack.c.h.b16 %v541
        %v716 = vunpack.c.l.b16 %v542
        %v717 = vunpack.c.h.b16 %v542
        %v718 = vunpack.c.l.b16 %v543
        %v719 = vunpack.c.h.b16 %v543
        %v720 = vunpack.c.l.b16 %v544
        %v721 = vunpack.c.h.b16 %v544
        %v722 = vunpack.c.l.b16 %v545
        %v723 = vunpack.c.h.b16 %v545
        %v724 = vunpack.c.l.b16 %v546
        %v725 = vunpack.c.h.b16 %v546
        %v726 = vunpack.c.l.b16 %v547
        %v727 = vunpack.c.h.b16 %v547
        %v728 = vunpack.c.l.b16 %v548
        %v729 = vunpack.c.h.b16 %v548
        %v730 = vunpack.c.l.b16 %v549
        %v731 = vunpack.c.h.b16 %v549
        %v732 = vunpack.c.l.b16 %v550
        %v733 = vunpack.c.h.b16 %v550
        %v734 = vunpack.c.l.b16 %v551
        %v735 = vunpack.c.h.b16 %v551
        %v736 = vunpack.c.l.b16 %v552
        %v737 = vunpack.c.h.b16 %v552
        %v738 = vunpack.c.l.b16 %v553
        %v739 = vunpack.c.h.b16 %v553
        %v740 = vunpack.c.l.b16 %v554
        %v741 = vunpack.c.h.b16 %v554
        %v742 = vunpack.c.l.b16 %v555
        %v743 = vunpack.c.h.b16 %v555
        %v744 = vunpack.c.l.b16 %v556
        %v745 = vunpack.c.h.b16 %v556
        %v746 = vunpack.c.l.b16 %v557
        %v747 = vunpack.c.h.b16 %v557
        %v748 = vunpack.c.l.b16 %v558
        %v749 = vunpack.c.h.b16 %v558
        %v750 = vunpack.c.l.b16 %v559
        %v751 = vunpack.c.h.b16 %v559
        %v752 = vunpack.c.l.b16 %v560
        %v753 = vunpack.c.h.b16 %v560
        %v754 = vunpack.c.l.b16 %v561
        %v755 = vunpack.c.h.b16 %v561
        %v756 = vunpack.c.l.b16 %v562
        %v757 = vunpack.c.h.b16 %v562
        %v758 = vunpack.c.l.b16 %v563
        %v759 = vunpack.c.h.b16 %v563
        %v760 = vunpack.c.l.b16 %v564
        %v761 = vunpack.c.h.b16 %v564
        %v762 = vunpack.c.l.b16 %v565
        %v763 = vunpack.c.h.b16 %v565
        %v764 = vunpack.c.l.b16 %v566
        %v765 = vunpack.c.h.b16 %v566
        %v766 = vunpack.c.l.b16 %v567
        %v767 = vunpack.c.h.b16 %v567
        %v768 = vunpack.c.l.b16 %v568
        %v769 = vunpack.c.h.b16 %v568
        %v770 = vunpack.c.l.b16 %v569
        %v771 = vunpack.c.h.b16 %v569
        %v772 = vunpack.c.l.b16 %v570
        %v773 = vunpack.c.h.b16 %v570
        %v774 = vunpack.c.l.b16 %v571
        %v775 = vunpack.c.h.b16 %v571
        %v776 = vunpack.c.l.b16 %v572
        %v777 = vunpack.c.h.b16 %v572
        %v778 = vunpack.c.l.b16 %v573
        %v779 = vunpack.c.h.b16 %v573
        %v780 = vunpack.c.l.b16 %v574
        %v781 = vunpack.c.h.b16 %v574
        %v782 = vunpack.c.l.b16 %v575
        %v783 = vunpack.c.h.b16 %v575
        %v784 = vunpack.c.l.b16 %v576
        %v785 = vunpack.c.h.b16 %v576
        %v786 = vunpack.c.l.b16 %v577
        %v787 = vunpack.c.h.b16 %v577
        %v788 = vunpack.c.l.b16 %v578
        %v789 = vunpack.c.h.b16 %v578
        %v790 = vunpack.c.l.b16 %v579
        %v791 = vunpack.c.h.b16 %v579
        %v792 = vunpack.c.l.b16 %v580
        %v793 = vunpack.c.h.b16 %v580
        %v794 = vunpack.c.l.b16 %v581
        %v795 = vunpack.c.h.b16 %v581
        %v796 = vunpack.c.l.b16 %v582
        %v797 = vunpack.c.h.b16 %v582
        %v798 = vunpack.c.l.b16 %v583
        %v799 = vunpack.c.h.b16 %v583
        %v800 = vunpack.c.l.b16 %v584
        %v801 = vunpack.c.h.b16 %v584
        %v802 = vunpack.c.l.b16 %v585
        %v803 = vunpack.c.h.b16 %v585
        %v804 = vunpack.c.l.b16 %v586
        %v805 = vunpack.c.h.b16 %v586
        %v806 = vunpack.c.l.b16 %v587
        %v807 = vunpack.c.h.b16 %v587
        %v808 = vunpack.c.l.b16 %v588
        %v809 = vunpack.c.h.b16 %v588
        %v810 = vunpack.c.l.b16 %v589
        %v811 = vunpack.c.h.b16 %v589
        %v812 = vunpack.c.l.b16 %v590
        %v813 = vunpack.c.h.b16 %v590
        %v814 = vunpack.c.l.b16 %v591
        %v815 = vunpack.c.h.b16 %v591
        %v816 = vpack.c.b16 %v690, %v688
        %v817 = vpack.c.b16 %v691, %v689
        %v818 = vpack.c.b16 %v694, %v692
        %v819 = vpack.c.b16 %v695, %v693
        %v820 = vpack.c.b16 %v698, %v696
        %v821 = vpack.c.b16 %v699, %v697
        %v822 = vpack.c.b16 %v702, %v700
        %v823 = vpack.c.b16 %v703, %v701
        %v824 = vpack.c.b16 %v706, %v704
        %v825 = vpack.c.b16 %v707, %v705
        %v826 = vpack.c.b16 %v710, %v708
        %v827 = vpack.c.b16 %v711, %v709
        %v828 = vpack.c.b16 %v714, %v712
        %v829 = vpack.c.b16 %v715, %v713
        %v830 = vpack.c.b16 %v718, %v716
        %v831 = vpack.c.b16 %v719, %v717
        %v832 = vpack.c.b16 %v722, %v720
        %v833 = vpack.c.b16 %v723, %v721
        %v834 = vpack.c.b16 %v726, %v724
        %v835 = vpack.c.b16 %v727, %v725
        %v836 = vpack.c.b16 %v730, %v728
        %v837 = vpack.c.b16 %v731, %v729
        %v838 = vpack.c.b16 %v734, %v732
        %v839 = vpack.c.b16 %v735, %v733
        %v840 = vpack.c.b16 %v738, %v736
        %v841 = vpack.c.b16 %v739, %v737
        %v842 = vpack.c.b16 %v742, %v740
        %v843 = vpack.c.b16 %v743, %v741
        %v844 = vpack.c.b16 %v746, %v744
        %v845 = vpack.c.b16 %v747, %v745
        %v846 = vpack.c.b16 %v750, %v748
        %v847 = vpack.c.b16 %v751, %v749
        %v848 = vpack.c.b16 %v754, %v752
        %v849 = vpack.c.b16 %v755, %v753
        %v850 = vpack.c.b16 %v758, %v756
        %v851 = vpack.c.b16 %v759, %v757
        %v852 = vpack.c.b16 %v762, %v760
        %v853 = vpack.c.b16 %v763, %v761
        %v854 = vpack.c.b16 %v766, %v764
        %v855 = vpack.c.b16 %v767, %v765
        %v856 = vpack.c.b16 %v770, %v768
        %v857 = vpack.c.b16 %v771, %v769
        %v858 = vpack.c.b16 %v774, %v772
        %v859 = vpack.c.b16 %v775, %v773
        %v860 = vpack.c.b16 %v778, %v776
        %v861 = vpack.c.b16 %v779, %v777
        %v862 = vpack.c.b16 %v782, %v780
        %v863 = vpack.c.b16 %v783, %v781
        %v864 = vpack.c.b16 %v786, %v784
        %v865 = vpack.c.b16 %v787, %v785
        %v866 = vpack.c.b16 %v790, %v788
        %v867 = vpack.c.b16 %v791, %v789
        %v868 = vpack.c.b16 %v794, %v792
        %v869 = vpack.c.b16 %v795, %v793
        %v870 = vpack.c.b16 %v798, %v796
        %v871 = vpack.c.b16 %v799, %v797
        %v872 = vpack.c.b16 %v802, %v800
        %v873 = vpack.c.b16 %v803, %v801
        %v874 = vpack.c.b16 %v806, %v804
        %v875 = vpack.c.b16 %v807, %v805
        %v876 = vpack.c.b16 %v810, %v808
        %v877 = vpack.c.b16 %v811, %v809
        %v878 = vpack.c.b16 %v814, %v812
        %v879 = vpack.c.b16 %v815, %v813
        %v976 = vunpack.c.l.b16 %v592
        %v977 = vunpack.c.h.b16 %v592
        %v978 = vunpack.c.l.b16 %v593
        %v979 = vunpack.c.h.b16 %v593
        %v980 = vunpack.c.l.b16 %v594
        %v981 = vunpack.c.h.b16 %v594
        %v982 = vunpack.c.l.b16 %v595
        %v983 = vunpack.c.h.b16 %v595
        %v984 = vunpack.c.l.b16 %v596
        %v985 = vunpack.c.h.b16 %v596
        %v986 = vunpack.c.l.b16 %v597
        %v987 = vunpack.c.h.b16 %v597
        %v988 = vunpack.c.l.b16 %v598
        %v989 = vunpack.c.h.b16 %v598
        %v990 = vunpack.c.l.b16 %v599
        %v991 = vunpack.c.h.b16 %v599
        %v992 = vunpack.c.l.b16 %v600
        %v993 = vunpack.c.h.b16 %v600
        %v994 = vunpack.c.l.b16 %v601
        %v995 = vunpack.c.h.b16 %v601
        %v996 = vunpack.c.l.b16 %v602
        %v997 = vunpack.c.h.b16 %v602
        %v998 = vunpack.c.l.b16 %v603
        %v999 = vunpack.c.h.b16 %v603
        %v1000 = vunpack.c.l.b16 %v604
        %v1001 = vunpack.c.h.b16 %v604
        %v1002 = vunpack.c.l.b16 %v605
        %v1003 = vunpack.c.h.b16 %v605
        %v1004 = vunpack.c.l.b16 %v606
        %v1005 = vunpack.c.h.b16 %v606
        %v1006 = vunpack.c.l.b16 %v607
        %v1007 = vunpack.c.h.b16 %v607
        %v1008 = vunpack.c.l.b16 %v608
        %v1009 = vunpack.c.h.b16 %v608
        %v1010 = vunpack.c.l.b16 %v609
        %v1011 = vunpack.c.h.b16 %v609
        %v1012 = vunpack.c.l.b16 %v610
        %v1013 = vunpack.c.h.b16 %v610
        %v1014 = vunpack.c.l.b16 %v611
        %v1015 = vunpack.c.h.b16 %v611
        %v1016 = vunpack.c.l.b16 %v612
        %v1017 = vunpack.c.h.b16 %v612
        %v1018 = vunpack.c.l.b16 %v613
        %v1019 = vunpack.c.h.b16 %v613
        %v1020 = vunpack.c.l.b16 %v614
        %v1021 = vunpack.c.h.b16 %v614
        %v1022 = vunpack.c.l.b16 %v615
        %v1023 = vunpack.c.h.b16 %v615
        %v1024 = vunpack.c.l.b16 %v616
        %v1025 = vunpack.c.h.b16 %v616
        %v1026 = vunpack.c.l.b16 %v617
        %v1027 = vunpack.c.h.b16 %v617
        %v1028 = vunpack.c.l.b16 %v618
        %v1029 = vunpack.c.h.b16 %v618
        %v1030 = vunpack.c.l.b16 %v619
        %v1031 = vunpack.c.h.b16 %v619
        %v1032 = vunpack.c.l.b16 %v620
        %v1033 = vunpack.c.h.b16 %v620
        %v1034 = vunpack.c.l.b16 %v621
        %v1035 = vunpack.c.h.b16 %v621
        %v1036 = vunpack.c.l.b16 %v622
        %v1037 = vunpack.c.h.b16 %v622
        %v1038 = vunpack.c.l.b16 %v623
        %v1039 = vunpack.c.h.b16 %v623
        %v1040 = vpack.c.b16 %v978, %v976
        %v1041 = vpack.c.b16 %v979, %v977
        %v1042 = vpack.c.b16 %v982, %v980
        %v1043 = vpack.c.b16 %v983, %v981
        %v1044 = vpack.c.b16 %v986, %v984
        %v1045 = vpack.c.b16 %v987, %v985
        %v1046 = vpack.c.b16 %v990, %v988
        %v1047 = vpack.c.b16 %v991, %v989
        %v1048 = vpack.c.b16 %v994, %v992
        %v1049 = vpack.c.b16 %v995, %v993
        %v1050 = vpack.c.b16 %v998, %v996
        %v1051 = vpack.c.b16 %v999, %v997
        %v1052 = vpack.c.b16 %v1002, %v1000
        %v1053 = vpack.c.b16 %v1003, %v1001
        %v1054 = vpack.c.b16 %v1006, %v1004
        %v1055 = vpack.c.b16 %v1007, %v1005
        %v1056 = vpack.c.b16 %v1010, %v1008
        %v1057 = vpack.c.b16 %v1011, %v1009
        %v1058 = vpack.c.b16 %v1014, %v1012
        %v1059 = vpack.c.b16 %v1015, %v1013
        %v1060 = vpack.c.b16 %v1018, %v1016
        %v1061 = vpack.c.b16 %v1019, %v1017
        %v1062 = vpack.c.b16 %v1022, %v1020
        %v1063 = vpack.c.b16 %v1023, %v1021
        %v1064 = vpack.c.b16 %v1026, %v1024
        %v1065 = vpack.c.b16 %v1027, %v1025
        %v1066 = vpack.c.b16 %v1030, %v1028
        %v1067 = vpack.c.b16 %v1031, %v1029
        %v1068 = vpack.c.b16 %v1034, %v1032
        %v1069 = vpack.c.b16 %v1035, %v1033
        %v1070 = vpack.c.b16 %v1038, %v1036
        %v1071 = vpack.c.b16 %v1039, %v1037
        %1104 = vmatprep.subr.bf16.mxu0 %v1041
        %1105 = vmatpush1.bf16.msra.mxu0 %v1040
        %1106 = vmatprep.subr.bf16.mxu0 %v1043
        %1107 = vmatpush1.bf16.msra.mxu0 %v1042
        %1108 = vmatprep.subr.bf16.mxu0 %v1045
        %1109 = vmatpush1.bf16.msra.mxu0 %v1044
        %1110 = vmatprep.subr.bf16.mxu0 %v1047
        %1111 = vmatpush1.bf16.msra.mxu0 %v1046
        %1112 = vmatprep.subr.bf16.mxu0 %v1049
        %1113 = vmatpush1.bf16.msra.mxu0 %v1048
        %1114 = vmatprep.subr.bf16.mxu0 %v1051
        %1115 = vmatpush1.bf16.msra.mxu0 %v1050
        %1116 = vmatprep.subr.bf16.mxu0 %v1053
        %1117 = vmatpush1.bf16.msra.mxu0 %v1052
        %1118 = vmatprep.subr.bf16.mxu0 %v1055
        %1119 = vmatpush1.bf16.msra.mxu0 %v1054
        %1120 = vmatprep.subr.bf16.mxu0 %v1057
        %1121 = vmatpush1.bf16.msra.mxu0 %v1056
        %1122 = vmatprep.subr.bf16.mxu0 %v1059
        %1123 = vmatpush1.bf16.msra.mxu0 %v1058
        %1124 = vmatprep.subr.bf16.mxu0 %v1061
        %1125 = vmatpush1.bf16.msra.mxu0 %v1060
        %1126 = vmatprep.subr.bf16.mxu0 %v1063
        %1127 = vmatpush1.bf16.msra.mxu0 %v1062
        %1128 = vmatprep.subr.bf16.mxu0 %v1065
        %1129 = vmatpush1.bf16.msra.mxu0 %v1064
        %1130 = vmatprep.subr.bf16.mxu0 %v1067
        %1131 = vmatpush1.bf16.msra.mxu0 %v1066
        %1132 = vmatprep.subr.bf16.mxu0 %v1069
        %1133 = vmatpush1.bf16.msra.mxu0 %v1068
        %1134 = vmatprep.subr.bf16.mxu0 %v1071
        %1135 = vmatpush1.bf16.msra.mxu0 %v1070
        %1136 = vmatprep.mubr.bf16.mxu0 %v817
        %1137 = vmatmul.mubr.bf16.gmra.mrb[0].mxu0 %v816
        %v1138 = vpop.f32.mrb[0].mxu0
        %v1139 = vadd.f32 0.0, %v1138
        %v1140 = vpop.f32.mrb[0].mxu0
        %v1141 = vadd.f32 0.0, %v1140
        %v1142 = vpop.f32.mrb[0].mxu0
        %v1143 = vadd.f32 0.0, %v1142
        %v1144 = vpop.f32.mrb[0].mxu0
        %v1145 = vadd.f32 0.0, %v1144
        %1146 = vmatprep.mubr.bf16.mxu0 %v819
        %1147 = vmatmul.mubr.bf16.gmra.mrb[0].mxu0 %v818
        %v1148 = vpop.f32.mrb[0].mxu0
        %v1149 = vadd.f32 0.0, %v1148
        %v1150 = vpop.f32.mrb[0].mxu0
        %v1151 = vadd.f32 0.0, %v1150
        %v1152 = vpop.f32.mrb[0].mxu0
        %v1153 = vadd.f32 0.0, %v1152
        %v1154 = vpop.f32.mrb[0].mxu0
        %v1155 = vadd.f32 0.0, %v1154
        %1156 = vmatprep.mubr.bf16.mxu0 %v821
        %1157 = vmatmul.mubr.bf16.gmra.mrb[0].mxu0 %v820
        %v1158 = vpop.f32.mrb[0].mxu0
        %v1159 = vadd.f32 0.0, %v1158
        %v1160 = vpop.f32.mrb[0].mxu0
        %v1161 = vadd.f32 0.0, %v1160
        %v1162 = vpop.f32.mrb[0].mxu0
        %v1163 = vadd.f32 0.0, %v1162
        %v1164 = vpop.f32.mrb[0].mxu0
        %v1165 = vadd.f32 0.0, %v1164
        %1166 = vmatprep.mubr.bf16.mxu0 %v823
        %1167 = vmatmul.mubr.bf16.gmra.mrb[0].mxu0 %v822
        %v1168 = vpop.f32.mrb[0].mxu0
        %v1169 = vadd.f32 0.0, %v1168
        %v1170 = vpop.f32.mrb[0].mxu0
        %v1171 = vadd.f32 0.0, %v1170
        %v1172 = vpop.f32.mrb[0].mxu0
        %v1173 = vadd.f32 0.0, %v1172
        %v1174 = vpop.f32.mrb[0].mxu0
        %v1175 = vadd.f32 0.0, %v1174
        %1176 = vmatprep.mubr.bf16.mxu0 %v825
        %1177 = vmatmul.mubr.bf16.gmra.mrb[0].mxu0 %v824
        %v1178 = vpop.f32.mrb[0].mxu0
        %v1179 = vadd.f32 0.0, %v1178
        %v1180 = vpop.f32.mrb[0].mxu0
        %v1181 = vadd.f32 0.0, %v1180
        %v1182 = vpop.f32.mrb[0].mxu0
        %v1183 = vadd.f32 0.0, %v1182
        %v1184 = vpop.f32.mrb[0].mxu0
        %v1185 = vadd.f32 0.0, %v1184
        %1186 = vmatprep.mubr.bf16.mxu0 %v827
        %1187 = vmatmul.mubr.bf16.gmra.mrb[0].mxu0 %v826
        %v1188 = vpop.f32.mrb[0].mxu0
        %v1189 = vadd.f32 0.0, %v1188
        %v1190 = vpop.f32.mrb[0].mxu0
        %v1191 = vadd.f32 0.0, %v1190
        %v1192 = vpop.f32.mrb[0].mxu0
        %v1193 = vadd.f32 0.0, %v1192
        %v1194 = vpop.f32.mrb[0].mxu0
        %v1195 = vadd.f32 0.0, %v1194
        %1196 = vmatprep.mubr.bf16.mxu0 %v829
        %1197 = vmatmul.mubr.bf16.gmra.mrb[0].mxu0 %v828
        %v1198 = vpop.f32.mrb[0].mxu0
        %v1199 = vadd.f32 0.0, %v1198
        %v1200 = vpop.f32.mrb[0].mxu0
        %v1201 = vadd.f32 0.0, %v1200
        %v1202 = vpop.f32.mrb[0].mxu0
        %v1203 = vadd.f32 0.0, %v1202
        %v1204 = vpop.f32.mrb[0].mxu0
        %v1205 = vadd.f32 0.0, %v1204
        %1206 = vmatprep.mubr.bf16.mxu0 %v831
        %1207 = vmatmul.mubr.bf16.gmra.mrb[0].mxu0 %v830
        %v1208 = vpop.f32.mrb[0].mxu0
        %v1209 = vadd.f32 0.0, %v1208
        %v1210 = vpop.f32.mrb[0].mxu0
        %v1211 = vadd.f32 0.0, %v1210
        %v1212 = vpop.f32.mrb[0].mxu0
        %v1213 = vadd.f32 0.0, %v1212
        %v1214 = vpop.f32.mrb[0].mxu0
        %v1215 = vadd.f32 0.0, %v1214
        %1216 = vmatprep.mubr.bf16.mxu0 %v833
        %1217 = vmatmul.mubr.bf16.gmra.mrb[0].mxu0 %v832
        %v1218 = vpop.f32.mrb[0].mxu0
        %v1219 = vadd.f32 0.0, %v1218
        %v1220 = vpop.f32.mrb[0].mxu0
        %v1221 = vadd.f32 0.0, %v1220
        %v1222 = vpop.f32.mrb[0].mxu0
        %v1223 = vadd.f32 0.0, %v1222
        %v1224 = vpop.f32.mrb[0].mxu0
        %v1225 = vadd.f32 0.0, %v1224
        %1226 = vmatprep.mubr.bf16.mxu0 %v835
        %1227 = vmatmul.mubr.bf16.gmra.mrb[0].mxu0 %v834
        %v1228 = vpop.f32.mrb[0].mxu0
        %v1229 = vadd.f32 0.0, %v1228
        %v1230 = vpop.f32.mrb[0].mxu0
        %v1231 = vadd.f32 0.0, %v1230
        %v1232 = vpop.f32.mrb[0].mxu0
        %v1233 = vadd.f32 0.0, %v1232
        %v1234 = vpop.f32.mrb[0].mxu0
        %v1235 = vadd.f32 0.0, %v1234
        %1236 = vmatprep.mubr.bf16.mxu0 %v837
        %1237 = vmatmul.mubr.bf16.gmra.mrb[0].mxu0 %v836
        %v1238 = vpop.f32.mrb[0].mxu0
        %v1239 = vadd.f32 0.0, %v1238
        %v1240 = vpop.f32.mrb[0].mxu0
        %v1241 = vadd.f32 0.0, %v1240
        %v1242 = vpop.f32.mrb[0].mxu0
        %v1243 = vadd.f32 0.0, %v1242
        %v1244 = vpop.f32.mrb[0].mxu0
        %v1245 = vadd.f32 0.0, %v1244
        %1246 = vmatprep.mubr.bf16.mxu0 %v839
        %1247 = vmatmul.mubr.bf16.gmra.mrb[0].mxu0 %v838
        %v1248 = vpop.f32.mrb[0].mxu0
        %v1249 = vadd.f32 0.0, %v1248
        %v1250 = vpop.f32.mrb[0].mxu0
        %v1251 = vadd.f32 0.0, %v1250
        %v1252 = vpop.f32.mrb[0].mxu0
        %v1253 = vadd.f32 0.0, %v1252
        %v1254 = vpop.f32.mrb[0].mxu0
        %v1255 = vadd.f32 0.0, %v1254
        %1256 = vmatprep.mubr.bf16.mxu0 %v841
        %1257 = vmatmul.mubr.bf16.gmra.mrb[0].mxu0 %v840
        %v1258 = vpop.f32.mrb[0].mxu0
        %v1259 = vadd.f32 0.0, %v1258
        %v1260 = vpop.f32.mrb[0].mxu0
        %v1261 = vadd.f32 0.0, %v1260
        %v1262 = vpop.f32.mrb[0].mxu0
        %v1263 = vadd.f32 0.0, %v1262
        %v1264 = vpop.f32.mrb[0].mxu0
        %v1265 = vadd.f32 0.0, %v1264
        %1266 = vmatprep.mubr.bf16.mxu0 %v843
        %1267 = vmatmul.mubr.bf16.gmra.mrb[0].mxu0 %v842
        %v1268 = vpop.f32.mrb[0].mxu0
        %v1269 = vadd.f32 0.0, %v1268
        %v1270 = vpop.f32.mrb[0].mxu0
        %v1271 = vadd.f32 0.0, %v1270
        %v1272 = vpop.f32.mrb[0].mxu0
        %v1273 = vadd.f32 0.0, %v1272
        %v1274 = vpop.f32.mrb[0].mxu0
        %v1275 = vadd.f32 0.0, %v1274
        %1276 = vmatprep.mubr.bf16.mxu0 %v845
        %1277 = vmatmul.mubr.bf16.gmra.mrb[0].mxu0 %v844
        %v1278 = vpop.f32.mrb[0].mxu0
        %v1279 = vadd.f32 0.0, %v1278
        %v1280 = vpop.f32.mrb[0].mxu0
        %v1281 = vadd.f32 0.0, %v1280
        %v1282 = vpop.f32.mrb[0].mxu0
        %v1283 = vadd.f32 0.0, %v1282
        %v1284 = vpop.f32.mrb[0].mxu0
        %v1285 = vadd.f32 0.0, %v1284
        %1286 = vmatprep.mubr.bf16.mxu0 %v847
        %1287 = vmatmul.mubr.bf16.gmra.mrb[0].mxu0 %v846
        %v1288 = vpop.f32.mrb[0].mxu0
        %v1289 = vadd.f32 0.0, %v1288
        %v1290 = vpop.f32.mrb[0].mxu0
        %v1291 = vadd.f32 0.0, %v1290
        %v1292 = vpop.f32.mrb[0].mxu0
        %v1293 = vadd.f32 0.0, %v1292
        %v1294 = vpop.f32.mrb[0].mxu0
        %v1295 = vadd.f32 0.0, %v1294
        %1296 = vmatprep.mubr.bf16.mxu0 %v849
        %1297 = vmatmul.mubr.bf16.gmra.mrb[0].mxu0 %v848
        %v1298 = vpop.f32.mrb[0].mxu0
        %v1299 = vadd.f32 0.0, %v1298
        %v1300 = vpop.f32.mrb[0].mxu0
        %v1301 = vadd.f32 0.0, %v1300
        %v1302 = vpop.f32.mrb[0].mxu0
        %v1303 = vadd.f32 0.0, %v1302
        %v1304 = vpop.f32.mrb[0].mxu0
        %v1305 = vadd.f32 0.0, %v1304
        %1306 = vmatprep.mubr.bf16.mxu0 %v851
        %1307 = vmatmul.mubr.bf16.gmra.mrb[0].mxu0 %v850
        %v1308 = vpop.f32.mrb[0].mxu0
        %v1309 = vadd.f32 0.0, %v1308
        %v1310 = vpop.f32.mrb[0].mxu0
        %v1311 = vadd.f32 0.0, %v1310
        %v1312 = vpop.f32.mrb[0].mxu0
        %v1313 = vadd.f32 0.0, %v1312
        %v1314 = vpop.f32.mrb[0].mxu0
        %v1315 = vadd.f32 0.0, %v1314
        %1316 = vmatprep.mubr.bf16.mxu0 %v853
        %1317 = vmatmul.mubr.bf16.gmra.mrb[0].mxu0 %v852
        %v1318 = vpop.f32.mrb[0].mxu0
        %v1319 = vadd.f32 0.0, %v1318
        %v1320 = vpop.f32.mrb[0].mxu0
        %v1321 = vadd.f32 0.0, %v1320
        %v1322 = vpop.f32.mrb[0].mxu0
        %v1323 = vadd.f32 0.0, %v1322
        %v1324 = vpop.f32.mrb[0].mxu0
        %v1325 = vadd.f32 0.0, %v1324
        %1326 = vmatprep.mubr.bf16.mxu0 %v855
        %1327 = vmatmul.mubr.bf16.gmra.mrb[0].mxu0 %v854
        %v1328 = vpop.f32.mrb[0].mxu0
        %v1329 = vadd.f32 0.0, %v1328
        %v1330 = vpop.f32.mrb[0].mxu0
        %v1331 = vadd.f32 0.0, %v1330
        %v1332 = vpop.f32.mrb[0].mxu0
        %v1333 = vadd.f32 0.0, %v1332
        %v1334 = vpop.f32.mrb[0].mxu0
        %v1335 = vadd.f32 0.0, %v1334
        %1336 = vmatprep.mubr.bf16.mxu0 %v857
        %1337 = vmatmul.mubr.bf16.gmra.mrb[0].mxu0 %v856
        %v1338 = vpop.f32.mrb[0].mxu0
        %v1339 = vadd.f32 0.0, %v1338
        %v1340 = vpop.f32.mrb[0].mxu0
        %v1341 = vadd.f32 0.0, %v1340
        %v1342 = vpop.f32.mrb[0].mxu0
        %v1343 = vadd.f32 0.0, %v1342
        %v1344 = vpop.f32.mrb[0].mxu0
        %v1345 = vadd.f32 0.0, %v1344
        %1346 = vmatprep.mubr.bf16.mxu0 %v859
        %1347 = vmatmul.mubr.bf16.gmra.mrb[0].mxu0 %v858
        %v1348 = vpop.f32.mrb[0].mxu0
        %v1349 = vadd.f32 0.0, %v1348
        %v1350 = vpop.f32.mrb[0].mxu0
        %v1351 = vadd.f32 0.0, %v1350
        %v1352 = vpop.f32.mrb[0].mxu0
        %v1353 = vadd.f32 0.0, %v1352
        %v1354 = vpop.f32.mrb[0].mxu0
        %v1355 = vadd.f32 0.0, %v1354
        %1356 = vmatprep.mubr.bf16.mxu0 %v861
        %1357 = vmatmul.mubr.bf16.gmra.mrb[0].mxu0 %v860
        %v1358 = vpop.f32.mrb[0].mxu0
        %v1359 = vadd.f32 0.0, %v1358
        %v1360 = vpop.f32.mrb[0].mxu0
        %v1361 = vadd.f32 0.0, %v1360
        %v1362 = vpop.f32.mrb[0].mxu0
        %v1363 = vadd.f32 0.0, %v1362
        %v1364 = vpop.f32.mrb[0].mxu0
        %v1365 = vadd.f32 0.0, %v1364
        %1366 = vmatprep.mubr.bf16.mxu0 %v863
        %1367 = vmatmul.mubr.bf16.gmra.mrb[0].mxu0 %v862
        %v1368 = vpop.f32.mrb[0].mxu0
        %v1369 = vadd.f32 0.0, %v1368
        %v1370 = vpop.f32.mrb[0].mxu0
        %v1371 = vadd.f32 0.0, %v1370
        %v1372 = vpop.f32.mrb[0].mxu0
        %v1373 = vadd.f32 0.0, %v1372
        %v1374 = vpop.f32.mrb[0].mxu0
        %v1375 = vadd.f32 0.0, %v1374
        %1376 = vmatprep.mubr.bf16.mxu0 %v865
        %1377 = vmatmul.mubr.bf16.gmra.mrb[0].mxu0 %v864
        %v1378 = vpop.f32.mrb[0].mxu0
        %v1379 = vadd.f32 0.0, %v1378
        %v1380 = vpop.f32.mrb[0].mxu0
        %v1381 = vadd.f32 0.0, %v1380
        %v1382 = vpop.f32.mrb[0].mxu0
        %v1383 = vadd.f32 0.0, %v1382
        %v1384 = vpop.f32.mrb[0].mxu0
        %v1385 = vadd.f32 0.0, %v1384
        %1386 = vmatprep.mubr.bf16.mxu0 %v867
        %1387 = vmatmul.mubr.bf16.gmra.mrb[0].mxu0 %v866
        %v1388 = vpop.f32.mrb[0].mxu0
        %v1389 = vadd.f32 0.0, %v1388
        %v1390 = vpop.f32.mrb[0].mxu0
        %v1391 = vadd.f32 0.0, %v1390
        %v1392 = vpop.f32.mrb[0].mxu0
        %v1393 = vadd.f32 0.0, %v1392
        %v1394 = vpop.f32.mrb[0].mxu0
        %v1395 = vadd.f32 0.0, %v1394
        %1396 = vmatprep.mubr.bf16.mxu0 %v869
        %1397 = vmatmul.mubr.bf16.gmra.mrb[0].mxu0 %v868
        %v1398 = vpop.f32.mrb[0].mxu0
        %v1399 = vadd.f32 0.0, %v1398
        %v1400 = vpop.f32.mrb[0].mxu0
        %v1401 = vadd.f32 0.0, %v1400
        %v1402 = vpop.f32.mrb[0].mxu0
        %v1403 = vadd.f32 0.0, %v1402
        %v1404 = vpop.f32.mrb[0].mxu0
        %v1405 = vadd.f32 0.0, %v1404
        %1406 = vmatprep.mubr.bf16.mxu0 %v871
        %1407 = vmatmul.mubr.bf16.gmra.mrb[0].mxu0 %v870
        %v1408 = vpop.f32.mrb[0].mxu0
        %v1409 = vadd.f32 0.0, %v1408
        %v1410 = vpop.f32.mrb[0].mxu0
        %v1411 = vadd.f32 0.0, %v1410
        %v1412 = vpop.f32.mrb[0].mxu0
        %v1413 = vadd.f32 0.0, %v1412
        %v1414 = vpop.f32.mrb[0].mxu0
        %v1415 = vadd.f32 0.0, %v1414
        %1416 = vmatprep.mubr.bf16.mxu0 %v873
        %1417 = vmatmul.mubr.bf16.gmra.mrb[0].mxu0 %v872
        %v1418 = vpop.f32.mrb[0].mxu0
        %v1419 = vadd.f32 0.0, %v1418
        %v1420 = vpop.f32.mrb[0].mxu0
        %v1421 = vadd.f32 0.0, %v1420
        %v1422 = vpop.f32.mrb[0].mxu0
        %v1423 = vadd.f32 0.0, %v1422
        %v1424 = vpop.f32.mrb[0].mxu0
        %v1425 = vadd.f32 0.0, %v1424
        %1426 = vmatprep.mubr.bf16.mxu0 %v875
        %1427 = vmatmul.mubr.bf16.gmra.mrb[0].mxu0 %v874
        %v1428 = vpop.f32.mrb[0].mxu0
        %v1429 = vadd.f32 0.0, %v1428
        %v1430 = vpop.f32.mrb[0].mxu0
        %v1431 = vadd.f32 0.0, %v1430
        %v1432 = vpop.f32.mrb[0].mxu0
        %v1433 = vadd.f32 0.0, %v1432
        %v1434 = vpop.f32.mrb[0].mxu0
        %v1435 = vadd.f32 0.0, %v1434
        %1436 = vmatprep.mubr.bf16.mxu0 %v877
        %1437 = vmatmul.mubr.bf16.gmra.mrb[0].mxu0 %v876
        %v1438 = vpop.f32.mrb[0].mxu0
        %v1439 = vadd.f32 0.0, %v1438
        %v1440 = vpop.f32.mrb[0].mxu0
        %v1441 = vadd.f32 0.0, %v1440
        %v1442 = vpop.f32.mrb[0].mxu0
        %v1443 = vadd.f32 0.0, %v1442
        %v1444 = vpop.f32.mrb[0].mxu0
        %v1445 = vadd.f32 0.0, %v1444
        %1446 = vmatprep.mubr.bf16.mxu0 %v879
        %1447 = vmatmul.mubr.bf16.gmra.mrb[0].mxu0 %v878
        %v1448 = vpop.f32.mrb[0].mxu0
        %v1449 = vadd.f32 0.0, %v1448
        %v1450 = vpop.f32.mrb[0].mxu0
        %v1451 = vadd.f32 0.0, %v1450
        %v1452 = vpop.f32.mrb[0].mxu0
        %v1453 = vadd.f32 0.0, %v1452
        %v1454 = vpop.f32.mrb[0].mxu0
        %v1455 = vadd.f32 0.0, %v1454
        %1456 = vdwg.mxu0
        %v1457 = vadd.f32 %v400, %v1139
        %v1458 = vadd.f32 %v401, %v1141
        %v1459 = vadd.f32 %v402, %v1143
        %v1460 = vadd.f32 %v403, %v1145
        %v1461 = vadd.f32 %v404, %v1149
        %v1462 = vadd.f32 %v405, %v1151
        %v1463 = vadd.f32 %v406, %v1153
        %v1464 = vadd.f32 %v407, %v1155
        %v1465 = vadd.f32 %v408, %v1159
        %v1466 = vadd.f32 %v409, %v1161
        %v1467 = vadd.f32 %v410, %v1163
        %v1468 = vadd.f32 %v411, %v1165
        %v1469 = vadd.f32 %v412, %v1169
        %v1470 = vadd.f32 %v413, %v1171
        %v1471 = vadd.f32 %v414, %v1173
        %v1472 = vadd.f32 %v415, %v1175
        %v1473 = vadd.f32 %v416, %v1179
        %v1474 = vadd.f32 %v417, %v1181
        %v1475 = vadd.f32 %v418, %v1183
        %v1476 = vadd.f32 %v419, %v1185
        %v1477 = vadd.f32 %v420, %v1189
        %v1478 = vadd.f32 %v421, %v1191
        %v1479 = vadd.f32 %v422, %v1193
        %v1480 = vadd.f32 %v423, %v1195
        %v1481 = vadd.f32 %v424, %v1199
        %v1482 = vadd.f32 %v425, %v1201
        %v1483 = vadd.f32 %v426, %v1203
        %v1484 = vadd.f32 %v427, %v1205
        %v1485 = vadd.f32 %v428, %v1209
        %v1486 = vadd.f32 %v429, %v1211
        %v1487 = vadd.f32 %v430, %v1213
        %v1488 = vadd.f32 %v431, %v1215
        %v1489 = vadd.f32 %v432, %v1219
        %v1490 = vadd.f32 %v433, %v1221
        %v1491 = vadd.f32 %v434, %v1223
        %v1492 = vadd.f32 %v435, %v1225
        %v1493 = vadd.f32 %v436, %v1229
        %v1494 = vadd.f32 %v437, %v1231
        %v1495 = vadd.f32 %v438, %v1233
        %v1496 = vadd.f32 %v439, %v1235
        %v1497 = vadd.f32 %v440, %v1239
        %v1498 = vadd.f32 %v441, %v1241
        %v1499 = vadd.f32 %v442, %v1243
        %v1500 = vadd.f32 %v443, %v1245
        %v1501 = vadd.f32 %v444, %v1249
        %v1502 = vadd.f32 %v445, %v1251
        %v1503 = vadd.f32 %v446, %v1253
        %v1504 = vadd.f32 %v447, %v1255
        %v1505 = vadd.f32 %v448, %v1259
        %v1506 = vadd.f32 %v449, %v1261
        %v1507 = vadd.f32 %v450, %v1263
        %v1508 = vadd.f32 %v451, %v1265
        %v1509 = vadd.f32 %v452, %v1269
        %v1510 = vadd.f32 %v453, %v1271
        %v1511 = vadd.f32 %v454, %v1273
        %v1512 = vadd.f32 %v455, %v1275
        %v1513 = vadd.f32 %v456, %v1279
        %v1514 = vadd.f32 %v457, %v1281
        %v1515 = vadd.f32 %v458, %v1283
        %v1516 = vadd.f32 %v459, %v1285
        %v1517 = vadd.f32 %v460, %v1289
        %v1518 = vadd.f32 %v461, %v1291
        %v1519 = vadd.f32 %v462, %v1293
        %v1520 = vadd.f32 %v463, %v1295
        %v1521 = vadd.f32 %v464, %v1299
        %v1522 = vadd.f32 %v465, %v1301
        %v1523 = vadd.f32 %v466, %v1303
        %v1524 = vadd.f32 %v467, %v1305
        %v1525 = vadd.f32 %v468, %v1309
        %v1526 = vadd.f32 %v469, %v1311
        %v1527 = vadd.f32 %v470, %v1313
        %v1528 = vadd.f32 %v471, %v1315
        %v1529 = vadd.f32 %v472, %v1319
        %v1530 = vadd.f32 %v473, %v1321
        %v1531 = vadd.f32 %v474, %v1323
        %v1532 = vadd.f32 %v475, %v1325
        %v1533 = vadd.f32 %v476, %v1329
        %v1534 = vadd.f32 %v477, %v1331
        %v1535 = vadd.f32 %v478, %v1333
        %v1536 = vadd.f32 %v479, %v1335
        %v1537 = vadd.f32 %v480, %v1339
        %v1538 = vadd.f32 %v481, %v1341
        %v1539 = vadd.f32 %v482, %v1343
        %v1540 = vadd.f32 %v483, %v1345
        %v1541 = vadd.f32 %v484, %v1349
        %v1542 = vadd.f32 %v485, %v1351
        %v1543 = vadd.f32 %v486, %v1353
        %v1544 = vadd.f32 %v487, %v1355
        %v1545 = vadd.f32 %v488, %v1359
        %v1546 = vadd.f32 %v489, %v1361
        %v1547 = vadd.f32 %v490, %v1363
        %v1548 = vadd.f32 %v491, %v1365
        %v1549 = vadd.f32 %v492, %v1369
        %v1550 = vadd.f32 %v493, %v1371
        %v1551 = vadd.f32 %v494, %v1373
        %v1552 = vadd.f32 %v495, %v1375
        %v1553 = vadd.f32 %v496, %v1379
        %v1554 = vadd.f32 %v497, %v1381
        %v1555 = vadd.f32 %v498, %v1383
        %v1556 = vadd.f32 %v499, %v1385
        %v1557 = vadd.f32 %v500, %v1389
        %v1558 = vadd.f32 %v501, %v1391
        %v1559 = vadd.f32 %v502, %v1393
        %v1560 = vadd.f32 %v503, %v1395
        %v1561 = vadd.f32 %v504, %v1399
        %v1562 = vadd.f32 %v505, %v1401
        %v1563 = vadd.f32 %v506, %v1403
        %v1564 = vadd.f32 %v507, %v1405
        %v1565 = vadd.f32 %v508, %v1409
        %v1566 = vadd.f32 %v509, %v1411
        %v1567 = vadd.f32 %v510, %v1413
        %v1568 = vadd.f32 %v511, %v1415
        %v1569 = vadd.f32 %v512, %v1419
        %v1570 = vadd.f32 %v513, %v1421
        %v1571 = vadd.f32 %v514, %v1423
        %v1572 = vadd.f32 %v515, %v1425
        %v1573 = vadd.f32 %v516, %v1429
        %v1574 = vadd.f32 %v517, %v1431
        %v1575 = vadd.f32 %v518, %v1433
        %v1576 = vadd.f32 %v519, %v1435
        %v1577 = vadd.f32 %v520, %v1439
        %v1578 = vadd.f32 %v521, %v1441
        %v1579 = vadd.f32 %v522, %v1443
        %v1580 = vadd.f32 %v523, %v1445
        %v1581 = vadd.f32 %v524, %v1449
        %v1582 = vadd.f32 %v525, %v1451
        %v1583 = vadd.f32 %v526, %v1453
        %v1584 = vadd.f32 %v527, %v1455
        %1585 = vst [vmem:[#allocation2] sm:$0xff] %v1457
        %1586 = vst [vmem:[#allocation2 + $0x8] sm:$0xff] %v1458
        %1587 = vst [vmem:[#allocation2 + $0x10] sm:$0xff] %v1459
        %1588 = vst [vmem:[#allocation2 + $0x18] sm:$0xff] %v1460
        %1589 = vst [vmem:[#allocation2 + $0x20] sm:$0xff] %v1461
        %1590 = vst [vmem:[#allocation2 + $0x28] sm:$0xff] %v1462
        %1591 = vst [vmem:[#allocation2 + $0x30] sm:$0xff] %v1463
        %1592 = vst [vmem:[#allocation2 + $0x38] sm:$0xff] %v1464
        %1593 = vst [vmem:[#allocation2 + $0x40] sm:$0xff] %v1465
        %1594 = vst [vmem:[#allocation2 + $0x48] sm:$0xff] %v1466
        %1595 = vst [vmem:[#allocation2 + $0x50] sm:$0xff] %v1467
        %1596 = vst [vmem:[#allocation2 + $0x58] sm:$0xff] %v1468
        %1597 = vst [vmem:[#allocation2 + $0x60] sm:$0xff] %v1469
        %1598 = vst [vmem:[#allocation2 + $0x68] sm:$0xff] %v1470
        %1599 = vst [vmem:[#allocation2 + $0x70] sm:$0xff] %v1471
        %1600 = vst [vmem:[#allocation2 + $0x78] sm:$0xff] %v1472
        %1601 = vst [vmem:[#allocation2 + $0x80] sm:$0xff] %v1473
        %1602 = vst [vmem:[#allocation2 + $0x88] sm:$0xff] %v1474
        %1603 = vst [vmem:[#allocation2 + $0x90] sm:$0xff] %v1475
        %1604 = vst [vmem:[#allocation2 + $0x98] sm:$0xff] %v1476
        %1605 = vst [vmem:[#allocation2 + $0xa0] sm:$0xff] %v1477
        %1606 = vst [vmem:[#allocation2 + $0xa8] sm:$0xff] %v1478
        %1607 = vst [vmem:[#allocation2 + $0xb0] sm:$0xff] %v1479
        %1608 = vst [vmem:[#allocation2 + $0xb8] sm:$0xff] %v1480
        %1609 = vst [vmem:[#allocation2 + $0xc0] sm:$0xff] %v1481
        %1610 = vst [vmem:[#allocation2 + $0xc8] sm:$0xff] %v1482
        %1611 = vst [vmem:[#allocation2 + $0xd0] sm:$0xff] %v1483
        %1612 = vst [vmem:[#allocation2 + $0xd8] sm:$0xff] %v1484
        %1613 = vst [vmem:[#allocation2 + $0xe0] sm:$0xff] %v1485
        %1614 = vst [vmem:[#allocation2 + $0xe8] sm:$0xff] %v1486
        %1615 = vst [vmem:[#allocation2 + $0xf0] sm:$0xff] %v1487
        %1616 = vst [vmem:[#allocation2 + $0xf8] sm:$0xff] %v1488
        %1617 = vst [vmem:[#allocation2 + $0x100] sm:$0xff] %v1489
        %1618 = vst [vmem:[#allocation2 + $0x108] sm:$0xff] %v1490
        %1619 = vst [vmem:[#allocation2 + $0x110] sm:$0xff] %v1491
        %1620 = vst [vmem:[#allocation2 + $0x118] sm:$0xff] %v1492
        %1621 = vst [vmem:[#allocation2 + $0x120] sm:$0xff] %v1493
        %1622 = vst [vmem:[#allocation2 + $0x128] sm:$0xff] %v1494
        %1623 = vst [vmem:[#allocation2 + $0x130] sm:$0xff] %v1495
        %1624 = vst [vmem:[#allocation2 + $0x138] sm:$0xff] %v1496
        %1625 = vst [vmem:[#allocation2 + $0x140] sm:$0xff] %v1497
        %1626 = vst [vmem:[#allocation2 + $0x148] sm:$0xff] %v1498
        %1627 = vst [vmem:[#allocation2 + $0x150] sm:$0xff] %v1499
        %1628 = vst [vmem:[#allocation2 + $0x158] sm:$0xff] %v1500
        %1629 = vst [vmem:[#allocation2 + $0x160] sm:$0xff] %v1501
        %1630 = vst [vmem:[#allocation2 + $0x168] sm:$0xff] %v1502
        %1631 = vst [vmem:[#allocation2 + $0x170] sm:$0xff] %v1503
        %1632 = vst [vmem:[#allocation2 + $0x178] sm:$0xff] %v1504
        %1633 = vst [vmem:[#allocation2 + $0x180] sm:$0xff] %v1505
        %1634 = vst [vmem:[#allocation2 + $0x188] sm:$0xff] %v1506
        %1635 = vst [vmem:[#allocation2 + $0x190] sm:$0xff] %v1507
        %1636 = vst [vmem:[#allocation2 + $0x198] sm:$0xff] %v1508
        %1637 = vst [vmem:[#allocation2 + $0x1a0] sm:$0xff] %v1509
        %1638 = vst [vmem:[#allocation2 + $0x1a8] sm:$0xff] %v1510
        %1639 = vst [vmem:[#allocation2 + $0x1b0] sm:$0xff] %v1511
        %1640 = vst [vmem:[#allocation2 + $0x1b8] sm:$0xff] %v1512
        %1641 = vst [vmem:[#allocation2 + $0x1c0] sm:$0xff] %v1513
        %1642 = vst [vmem:[#allocation2 + $0x1c8] sm:$0xff] %v1514
        %1643 = vst [vmem:[#allocation2 + $0x1d0] sm:$0xff] %v1515
        %1644 = vst [vmem:[#allocation2 + $0x1d8] sm:$0xff] %v1516
        %1645 = vst [vmem:[#allocation2 + $0x1e0] sm:$0xff] %v1517
        %1646 = vst [vmem:[#allocation2 + $0x1e8] sm:$0xff] %v1518
        %1647 = vst [vmem:[#allocation2 + $0x1f0] sm:$0xff] %v1519
        %1648 = vst [vmem:[#allocation2 + $0x1f8] sm:$0xff] %v1520
        %1649 = vst [vmem:[#allocation2 + $0x200] sm:$0xff] %v1521
        %1650 = vst [vmem:[#allocation2 + $0x208] sm:$0xff] %v1522
        %1651 = vst [vmem:[#allocation2 + $0x210] sm:$0xff] %v1523
        %1652 = vst [vmem:[#allocation2 + $0x218] sm:$0xff] %v1524
        %1653 = vst [vmem:[#allocation2 + $0x220] sm:$0xff] %v1525
        %1654 = vst [vmem:[#allocation2 + $0x228] sm:$0xff] %v1526
        %1655 = vst [vmem:[#allocation2 + $0x230] sm:$0xff] %v1527
        %1656 = vst [vmem:[#allocation2 + $0x238] sm:$0xff] %v1528
        %1657 = vst [vmem:[#allocation2 + $0x240] sm:$0xff] %v1529
        %1658 = vst [vmem:[#allocation2 + $0x248] sm:$0xff] %v1530
        %1659 = vst [vmem:[#allocation2 + $0x250] sm:$0xff] %v1531
        %1660 = vst [vmem:[#allocation2 + $0x258] sm:$0xff] %v1532
        %1661 = vst [vmem:[#allocation2 + $0x260] sm:$0xff] %v1533
        %1662 = vst [vmem:[#allocation2 + $0x268] sm:$0xff] %v1534
        %1663 = vst [vmem:[#allocation2 + $0x270] sm:$0xff] %v1535
        %1664 = vst [vmem:[#allocation2 + $0x278] sm:$0xff] %v1536
        %1665 = vst [vmem:[#allocation2 + $0x280] sm:$0xff] %v1537
        %1666 = vst [vmem:[#allocation2 + $0x288] sm:$0xff] %v1538
        %1667 = vst [vmem:[#allocation2 + $0x290] sm:$0xff] %v1539
        %1668 = vst [vmem:[#allocation2 + $0x298] sm:$0xff] %v1540
        %1669 = vst [vmem:[#allocation2 + $0x2a0] sm:$0xff] %v1541
        %1670 = vst [vmem:[#allocation2 + $0x2a8] sm:$0xff] %v1542
        %1671 = vst [vmem:[#allocation2 + $0x2b0] sm:$0xff] %v1543
        %1672 = vst [vmem:[#allocation2 + $0x2b8] sm:$0xff] %v1544
        %1673 = vst [vmem:[#allocation2 + $0x2c0] sm:$0xff] %v1545
        %1674 = vst [vmem:[#allocation2 + $0x2c8] sm:$0xff] %v1546
        %1675 = vst [vmem:[#allocation2 + $0x2d0] sm:$0xff] %v1547
        %1676 = vst [vmem:[#allocation2 + $0x2d8] sm:$0xff] %v1548
        %1677 = vst [vmem:[#allocation2 + $0x2e0] sm:$0xff] %v1549
        %1678 = vst [vmem:[#allocation2 + $0x2e8] sm:$0xff] %v1550
        %1679 = vst [vmem:[#allocation2 + $0x2f0] sm:$0xff] %v1551
        %1680 = vst [vmem:[#allocation2 + $0x2f8] sm:$0xff] %v1552
        %1681 = vst [vmem:[#allocation2 + $0x300] sm:$0xff] %v1553
        %1682 = vst [vmem:[#allocation2 + $0x308] sm:$0xff] %v1554
        %1683 = vst [vmem:[#allocation2 + $0x310] sm:$0xff] %v1555
        %1684 = vst [vmem:[#allocation2 + $0x318] sm:$0xff] %v1556
        %1685 = vst [vmem:[#allocation2 + $0x320] sm:$0xff] %v1557
        %1686 = vst [vmem:[#allocation2 + $0x328] sm:$0xff] %v1558
        %1687 = vst [vmem:[#allocation2 + $0x330] sm:$0xff] %v1559
        %1688 = vst [vmem:[#allocation2 + $0x338] sm:$0xff] %v1560
        %1689 = vst [vmem:[#allocation2 + $0x340] sm:$0xff] %v1561
        %1690 = vst [vmem:[#allocation2 + $0x348] sm:$0xff] %v1562
        %1691 = vst [vmem:[#allocation2 + $0x350] sm:$0xff] %v1563
        %1692 = vst [vmem:[#allocation2 + $0x358] sm:$0xff] %v1564
        %1693 = vst [vmem:[#allocation2 + $0x360] sm:$0xff] %v1565
        %1694 = vst [vmem:[#allocation2 + $0x368] sm:$0xff] %v1566
        %1695 = vst [vmem:[#allocation2 + $0x370] sm:$0xff] %v1567
        %1696 = vst [vmem:[#allocation2 + $0x378] sm:$0xff] %v1568
        %1697 = vst [vmem:[#allocation2 + $0x380] sm:$0xff] %v1569
        %1698 = vst [vmem:[#allocation2 + $0x388] sm:$0xff] %v1570
        %1699 = vst [vmem:[#allocation2 + $0x390] sm:$0xff] %v1571
        %1700 = vst [vmem:[#allocation2 + $0x398] sm:$0xff] %v1572
        %1701 = vst [vmem:[#allocation2 + $0x3a0] sm:$0xff] %v1573
        %1702 = vst [vmem:[#allocation2 + $0x3a8] sm:$0xff] %v1574
        %1703 = vst [vmem:[#allocation2 + $0x3b0] sm:$0xff] %v1575
        %1704 = vst [vmem:[#allocation2 + $0x3b8] sm:$0xff] %v1576
        %1705 = vst [vmem:[#allocation2 + $0x3c0] sm:$0xff] %v1577
        %1706 = vst [vmem:[#allocation2 + $0x3c8] sm:$0xff] %v1578
        %1707 = vst [vmem:[#allocation2 + $0x3d0] sm:$0xff] %v1579
        %1708 = vst [vmem:[#allocation2 + $0x3d8] sm:$0xff] %v1580
        %1709 = vst [vmem:[#allocation2 + $0x3e0] sm:$0xff] %v1581
        %1710 = vst [vmem:[#allocation2 + $0x3e8] sm:$0xff] %v1582
        %1711 = vst [vmem:[#allocation2 + $0x3f0] sm:$0xff] %v1583
        %1712 = vst [vmem:[#allocation2 + $0x3f8] sm:$0xff] %v1584
        // Predicated region
        $region45: #{tpu_custom_call.1} parent=31 // pred_check
          %p1713 = pneg %p268
        $region46: #{tpu_custom_call.1} parent=31 // pred_check_branch
          %1715 = sbr.rel (%p1713) target = $region48
        $region47: #{tpu_custom_call.1} parent=31 // pred_region
          %v1716 = vld [vmem:[#allocation2] sm:$0xff]
          %v1717 = vld [vmem:[#allocation2 + $0x8] sm:$0xff]
          %v1718 = vld [vmem:[#allocation2 + $0x10] sm:$0xff]
          %v1719 = vld [vmem:[#allocation2 + $0x18] sm:$0xff]
          %v1720 = vld [vmem:[#allocation2 + $0x20] sm:$0xff]
          %v1721 = vld [vmem:[#allocation2 + $0x28] sm:$0xff]
          %v1722 = vld [vmem:[#allocation2 + $0x30] sm:$0xff]
          %v1723 = vld [vmem:[#allocation2 + $0x38] sm:$0xff]
          %v1724 = vld [vmem:[#allocation2 + $0x40] sm:$0xff]
          %v1725 = vld [vmem:[#allocation2 + $0x48] sm:$0xff]
          %v1726 = vld [vmem:[#allocation2 + $0x50] sm:$0xff]
          %v1727 = vld [vmem:[#allocation2 + $0x58] sm:$0xff]
          %v1728 = vld [vmem:[#allocation2 + $0x60] sm:$0xff]
          %v1729 = vld [vmem:[#allocation2 + $0x68] sm:$0xff]
          %v1730 = vld [vmem:[#allocation2 + $0x70] sm:$0xff]
          %v1731 = vld [vmem:[#allocation2 + $0x78] sm:$0xff]
          %v1732 = vld [vmem:[#allocation2 + $0x80] sm:$0xff]
          %v1733 = vld [vmem:[#allocation2 + $0x88] sm:$0xff]
          %v1734 = vld [vmem:[#allocation2 + $0x90] sm:$0xff]
          %v1735 = vld [vmem:[#allocation2 + $0x98] sm:$0xff]
          %v1736 = vld [vmem:[#allocation2 + $0xa0] sm:$0xff]
          %v1737 = vld [vmem:[#allocation2 + $0xa8] sm:$0xff]
          %v1738 = vld [vmem:[#allocation2 + $0xb0] sm:$0xff]
          %v1739 = vld [vmem:[#allocation2 + $0xb8] sm:$0xff]
          %v1740 = vld [vmem:[#allocation2 + $0xc0] sm:$0xff]
          %v1741 = vld [vmem:[#allocation2 + $0xc8] sm:$0xff]
          %v1742 = vld [vmem:[#allocation2 + $0xd0] sm:$0xff]
          %v1743 = vld [vmem:[#allocation2 + $0xd8] sm:$0xff]
          %v1744 = vld [vmem:[#allocation2 + $0xe0] sm:$0xff]
          %v1745 = vld [vmem:[#allocation2 + $0xe8] sm:$0xff]
          %v1746 = vld [vmem:[#allocation2 + $0xf0] sm:$0xff]
          %v1747 = vld [vmem:[#allocation2 + $0xf8] sm:$0xff]
          %v1748 = vld [vmem:[#allocation2 + $0x100] sm:$0xff]
          %v1749 = vld [vmem:[#allocation2 + $0x108] sm:$0xff]
          %v1750 = vld [vmem:[#allocation2 + $0x110] sm:$0xff]
          %v1751 = vld [vmem:[#allocation2 + $0x118] sm:$0xff]
          %v1752 = vld [vmem:[#allocation2 + $0x120] sm:$0xff]
          %v1753 = vld [vmem:[#allocation2 + $0x128] sm:$0xff]
          %v1754 = vld [vmem:[#allocation2 + $0x130] sm:$0xff]
          %v1755 = vld [vmem:[#allocation2 + $0x138] sm:$0xff]
          %v1756 = vld [vmem:[#allocation2 + $0x140] sm:$0xff]
          %v1757 = vld [vmem:[#allocation2 + $0x148] sm:$0xff]
          %v1758 = vld [vmem:[#allocation2 + $0x150] sm:$0xff]
          %v1759 = vld [vmem:[#allocation2 + $0x158] sm:$0xff]
          %v1760 = vld [vmem:[#allocation2 + $0x160] sm:$0xff]
          %v1761 = vld [vmem:[#allocation2 + $0x168] sm:$0xff]
          %v1762 = vld [vmem:[#allocation2 + $0x170] sm:$0xff]
          %v1763 = vld [vmem:[#allocation2 + $0x178] sm:$0xff]
          %v1764 = vld [vmem:[#allocation2 + $0x180] sm:$0xff]
          %v1765 = vld [vmem:[#allocation2 + $0x188] sm:$0xff]
          %v1766 = vld [vmem:[#allocation2 + $0x190] sm:$0xff]
          %v1767 = vld [vmem:[#allocation2 + $0x198] sm:$0xff]
          %v1768 = vld [vmem:[#allocation2 + $0x1a0] sm:$0xff]
          %v1769 = vld [vmem:[#allocation2 + $0x1a8] sm:$0xff]
          %v1770 = vld [vmem:[#allocation2 + $0x1b0] sm:$0xff]
          %v1771 = vld [vmem:[#allocation2 + $0x1b8] sm:$0xff]
          %v1772 = vld [vmem:[#allocation2 + $0x1c0] sm:$0xff]
          %v1773 = vld [vmem:[#allocation2 + $0x1c8] sm:$0xff]
          %v1774 = vld [vmem:[#allocation2 + $0x1d0] sm:$0xff]
          %v1775 = vld [vmem:[#allocation2 + $0x1d8] sm:$0xff]
          %v1776 = vld [vmem:[#allocation2 + $0x1e0] sm:$0xff]
          %v1777 = vld [vmem:[#allocation2 + $0x1e8] sm:$0xff]
          %v1778 = vld [vmem:[#allocation2 + $0x1f0] sm:$0xff]
          %v1779 = vld [vmem:[#allocation2 + $0x1f8] sm:$0xff]
          %v1780 = vld [vmem:[#allocation2 + $0x200] sm:$0xff]
          %v1781 = vld [vmem:[#allocation2 + $0x208] sm:$0xff]
          %v1782 = vld [vmem:[#allocation2 + $0x210] sm:$0xff]
          %v1783 = vld [vmem:[#allocation2 + $0x218] sm:$0xff]
          %v1784 = vld [vmem:[#allocation2 + $0x220] sm:$0xff]
          %v1785 = vld [vmem:[#allocation2 + $0x228] sm:$0xff]
          %v1786 = vld [vmem:[#allocation2 + $0x230] sm:$0xff]
          %v1787 = vld [vmem:[#allocation2 + $0x238] sm:$0xff]
          %v1788 = vld [vmem:[#allocation2 + $0x240] sm:$0xff]
          %v1789 = vld [vmem:[#allocation2 + $0x248] sm:$0xff]
          %v1790 = vld [vmem:[#allocation2 + $0x250] sm:$0xff]
          %v1791 = vld [vmem:[#allocation2 + $0x258] sm:$0xff]
          %v1792 = vld [vmem:[#allocation2 + $0x260] sm:$0xff]
          %v1793 = vld [vmem:[#allocation2 + $0x268] sm:$0xff]
          %v1794 = vld [vmem:[#allocation2 + $0x270] sm:$0xff]
          %v1795 = vld [vmem:[#allocation2 + $0x278] sm:$0xff]
          %v1796 = vld [vmem:[#allocation2 + $0x280] sm:$0xff]
          %v1797 = vld [vmem:[#allocation2 + $0x288] sm:$0xff]
          %v1798 = vld [vmem:[#allocation2 + $0x290] sm:$0xff]
          %v1799 = vld [vmem:[#allocation2 + $0x298] sm:$0xff]
          %v1800 = vld [vmem:[#allocation2 + $0x2a0] sm:$0xff]
          %v1801 = vld [vmem:[#allocation2 + $0x2a8] sm:$0xff]
          %v1802 = vld [vmem:[#allocation2 + $0x2b0] sm:$0xff]
          %v1803 = vld [vmem:[#allocation2 + $0x2b8] sm:$0xff]
          %v1804 = vld [vmem:[#allocation2 + $0x2c0] sm:$0xff]
          %v1805 = vld [vmem:[#allocation2 + $0x2c8] sm:$0xff]
          %v1806 = vld [vmem:[#allocation2 + $0x2d0] sm:$0xff]
          %v1807 = vld [vmem:[#allocation2 + $0x2d8] sm:$0xff]
          %v1808 = vld [vmem:[#allocation2 + $0x2e0] sm:$0xff]
          %v1809 = vld [vmem:[#allocation2 + $0x2e8] sm:$0xff]
          %v1810 = vld [vmem:[#allocation2 + $0x2f0] sm:$0xff]
          %v1811 = vld [vmem:[#allocation2 + $0x2f8] sm:$0xff]
          %v1812 = vld [vmem:[#allocation2 + $0x300] sm:$0xff]
          %v1813 = vld [vmem:[#allocation2 + $0x308] sm:$0xff]
          %v1814 = vld [vmem:[#allocation2 + $0x310] sm:$0xff]
          %v1815 = vld [vmem:[#allocation2 + $0x318] sm:$0xff]
          %v1816 = vld [vmem:[#allocation2 + $0x320] sm:$0xff]
          %v1817 = vld [vmem:[#allocation2 + $0x328] sm:$0xff]
          %v1818 = vld [vmem:[#allocation2 + $0x330] sm:$0xff]
          %v1819 = vld [vmem:[#allocation2 + $0x338] sm:$0xff]
          %v1820 = vld [vmem:[#allocation2 + $0x340] sm:$0xff]
          %v1821 = vld [vmem:[#allocation2 + $0x348] sm:$0xff]
          %v1822 = vld [vmem:[#allocation2 + $0x350] sm:$0xff]
          %v1823 = vld [vmem:[#allocation2 + $0x358] sm:$0xff]
          %v1824 = vld [vmem:[#allocation2 + $0x360] sm:$0xff]
          %v1825 = vld [vmem:[#allocation2 + $0x368] sm:$0xff]
          %v1826 = vld [vmem:[#allocation2 + $0x370] sm:$0xff]
          %v1827 = vld [vmem:[#allocation2 + $0x378] sm:$0xff]
          %v1828 = vld [vmem:[#allocation2 + $0x380] sm:$0xff]
          %v1829 = vld [vmem:[#allocation2 + $0x388] sm:$0xff]
          %v1830 = vld [vmem:[#allocation2 + $0x390] sm:$0xff]
          %v1831 = vld [vmem:[#allocation2 + $0x398] sm:$0xff]
          %v1832 = vld [vmem:[#allocation2 + $0x3a0] sm:$0xff]
          %v1833 = vld [vmem:[#allocation2 + $0x3a8] sm:$0xff]
          %v1834 = vld [vmem:[#allocation2 + $0x3b0] sm:$0xff]
          %v1835 = vld [vmem:[#allocation2 + $0x3b8] sm:$0xff]
          %v1836 = vld [vmem:[#allocation2 + $0x3c0] sm:$0xff]
          %v1837 = vld [vmem:[#allocation2 + $0x3c8] sm:$0xff]
          %v1838 = vld [vmem:[#allocation2 + $0x3d0] sm:$0xff]
          %v1839 = vld [vmem:[#allocation2 + $0x3d8] sm:$0xff]
          %v1840 = vld [vmem:[#allocation2 + $0x3e0] sm:$0xff]
          %v1841 = vld [vmem:[#allocation2 + $0x3e8] sm:$0xff]
          %v1842 = vld [vmem:[#allocation2 + $0x3f0] sm:$0xff]
          %v1843 = vld [vmem:[#allocation2 + $0x3f8] sm:$0xff]
          %v1844 = vld [vmem:[%s264] sm:$0x3]
          %v1846 = vlaneseq
          %v1847 = vshrl.u32 %v1846, 7
          %v1848 = vsub.s32 0, %v1847
          %v1849 = vrot.slane %v1844, %v1848
          %v1850 = vlaneseq
          %v1851 = vshrl.u32 %v1850, 7
          %v1852 = vsub.s32 1, %v1851
          %v1853 = vrot.slane %v1844, %v1852
          %v1856 = vadd.f32 %v1716, %v1849
          %v1857 = vadd.f32 %v1717, %v1853
          %v1858 = vadd.f32 %v1718, %v1849
          %v1859 = vadd.f32 %v1719, %v1853
          %v1860 = vadd.f32 %v1720, %v1849
          %v1861 = vadd.f32 %v1721, %v1853
          %v1862 = vadd.f32 %v1722, %v1849
          %v1863 = vadd.f32 %v1723, %v1853
          %v1864 = vadd.f32 %v1724, %v1849
          %v1865 = vadd.f32 %v1725, %v1853
          %v1866 = vadd.f32 %v1726, %v1849
          %v1867 = vadd.f32 %v1727, %v1853
          %v1868 = vadd.f32 %v1728, %v1849
          %v1869 = vadd.f32 %v1729, %v1853
          %v1870 = vadd.f32 %v1730, %v1849
          %v1871 = vadd.f32 %v1731, %v1853
          %v1872 = vadd.f32 %v1732, %v1849
          %v1873 = vadd.f32 %v1733, %v1853
          %v1874 = vadd.f32 %v1734, %v1849
          %v1875 = vadd.f32 %v1735, %v1853
          %v1876 = vadd.f32 %v1736, %v1849
          %v1877 = vadd.f32 %v1737, %v1853
          %v1878 = vadd.f32 %v1738, %v1849
          %v1879 = vadd.f32 %v1739, %v1853
          %v1880 = vadd.f32 %v1740, %v1849
          %v1881 = vadd.f32 %v1741, %v1853
          %v1882 = vadd.f32 %v1742, %v1849
          %v1883 = vadd.f32 %v1743, %v1853
          %v1884 = vadd.f32 %v1744, %v1849
          %v1885 = vadd.f32 %v1745, %v1853
          %v1886 = vadd.f32 %v1746, %v1849
          %v1887 = vadd.f32 %v1747, %v1853
          %v1888 = vadd.f32 %v1748, %v1849
          %v1889 = vadd.f32 %v1749, %v1853
          %v1890 = vadd.f32 %v1750, %v1849
          %v1891 = vadd.f32 %v1751, %v1853
          %v1892 = vadd.f32 %v1752, %v1849
          %v1893 = vadd.f32 %v1753, %v1853
          %v1894 = vadd.f32 %v1754, %v1849
          %v1895 = vadd.f32 %v1755, %v1853
          %v1896 = vadd.f32 %v1756, %v1849
          %v1897 = vadd.f32 %v1757, %v1853
          %v1898 = vadd.f32 %v1758, %v1849
          %v1899 = vadd.f32 %v1759, %v1853
          %v1900 = vadd.f32 %v1760, %v1849
          %v1901 = vadd.f32 %v1761, %v1853
          %v1902 = vadd.f32 %v1762, %v1849
          %v1903 = vadd.f32 %v1763, %v1853
          %v1904 = vadd.f32 %v1764, %v1849
          %v1905 = vadd.f32 %v1765, %v1853
          %v1906 = vadd.f32 %v1766, %v1849
          %v1907 = vadd.f32 %v1767, %v1853
          %v1908 = vadd.f32 %v1768, %v1849
          %v1909 = vadd.f32 %v1769, %v1853
          %v1910 = vadd.f32 %v1770, %v1849
          %v1911 = vadd.f32 %v1771, %v1853
          %v1912 = vadd.f32 %v1772, %v1849
          %v1913 = vadd.f32 %v1773, %v1853
          %v1914 = vadd.f32 %v1774, %v1849
          %v1915 = vadd.f32 %v1775, %v1853
          %v1916 = vadd.f32 %v1776, %v1849
          %v1917 = vadd.f32 %v1777, %v1853
          %v1918 = vadd.f32 %v1778, %v1849
          %v1919 = vadd.f32 %v1779, %v1853
          %v1920 = vadd.f32 %v1780, %v1849
          %v1921 = vadd.f32 %v1781, %v1853
          %v1922 = vadd.f32 %v1782, %v1849
          %v1923 = vadd.f32 %v1783, %v1853
          %v1924 = vadd.f32 %v1784, %v1849
          %v1925 = vadd.f32 %v1785, %v1853
          %v1926 = vadd.f32 %v1786, %v1849
          %v1927 = vadd.f32 %v1787, %v1853
          %v1928 = vadd.f32 %v1788, %v1849
          %v1929 = vadd.f32 %v1789, %v1853
          %v1930 = vadd.f32 %v1790, %v1849
          %v1931 = vadd.f32 %v1791, %v1853
          %v1932 = vadd.f32 %v1792, %v1849
          %v1933 = vadd.f32 %v1793, %v1853
          %v1934 = vadd.f32 %v1794, %v1849
          %v1935 = vadd.f32 %v1795, %v1853
          %v1936 = vadd.f32 %v1796, %v1849
          %v1937 = vadd.f32 %v1797, %v1853
          %v1938 = vadd.f32 %v1798, %v1849
          %v1939 = vadd.f32 %v1799, %v1853
          %v1940 = vadd.f32 %v1800, %v1849
          %v1941 = vadd.f32 %v1801, %v1853
          %v1942 = vadd.f32 %v1802, %v1849
          %v1943 = vadd.f32 %v1803, %v1853
          %v1944 = vadd.f32 %v1804, %v1849
          %v1945 = vadd.f32 %v1805, %v1853
          %v1946 = vadd.f32 %v1806, %v1849
          %v1947 = vadd.f32 %v1807, %v1853
          %v1948 = vadd.f32 %v1808, %v1849
          %v1949 = vadd.f32 %v1809, %v1853
          %v1950 = vadd.f32 %v1810, %v1849
          %v1951 = vadd.f32 %v1811, %v1853
          %v1952 = vadd.f32 %v1812, %v1849
          %v1953 = vadd.f32 %v1813, %v1853
          %v1954 = vadd.f32 %v1814, %v1849
          %v1955 = vadd.f32 %v1815, %v1853
          %v1956 = vadd.f32 %v1816, %v1849
          %v1957 = vadd.f32 %v1817, %v1853
          %v1958 = vadd.f32 %v1818, %v1849
          %v1959 = vadd.f32 %v1819, %v1853
          %v1960 = vadd.f32 %v1820, %v1849
          %v1961 = vadd.f32 %v1821, %v1853
          %v1962 = vadd.f32 %v1822, %v1849
          %v1963 = vadd.f32 %v1823, %v1853
          %v1964 = vadd.f32 %v1824, %v1849
          %v1965 = vadd.f32 %v1825, %v1853
          %v1966 = vadd.f32 %v1826, %v1849
          %v1967 = vadd.f32 %v1827, %v1853
          %v1968 = vadd.f32 %v1828, %v1849
          %v1969 = vadd.f32 %v1829, %v1853
          %v1970 = vadd.f32 %v1830, %v1849
          %v1971 = vadd.f32 %v1831, %v1853
          %v1972 = vadd.f32 %v1832, %v1849
          %v1973 = vadd.f32 %v1833, %v1853
          %v1974 = vadd.f32 %v1834, %v1849
          %v1975 = vadd.f32 %v1835, %v1853
          %v1976 = vadd.f32 %v1836, %v1849
          %v1977 = vadd.f32 %v1837, %v1853
          %v1978 = vadd.f32 %v1838, %v1849
          %v1979 = vadd.f32 %v1839, %v1853
          %v1980 = vadd.f32 %v1840, %v1849
          %v1981 = vadd.f32 %v1841, %v1853
          %v1982 = vadd.f32 %v1842, %v1849
          %v1983 = vadd.f32 %v1843, %v1853
          %v1984 = vpack.c.bf16 %v1858, %v1856
          %v1985 = vpack.c.bf16 %v1859, %v1857
          %v1986 = vpack.c.bf16 %v1862, %v1860
          %v1987 = vpack.c.bf16 %v1863, %v1861
          %v1988 = vpack.c.bf16 %v1866, %v1864
          %v1989 = vpack.c.bf16 %v1867, %v1865
          %v1990 = vpack.c.bf16 %v1870, %v1868
          %v1991 = vpack.c.bf16 %v1871, %v1869
          %v1992 = vpack.c.bf16 %v1874, %v1872
          %v1993 = vpack.c.bf16 %v1875, %v1873
          %v1994 = vpack.c.bf16 %v1878, %v1876
          %v1995 = vpack.c.bf16 %v1879, %v1877
          %v1996 = vpack.c.bf16 %v1882, %v1880
          %v1997 = vpack.c.bf16 %v1883, %v1881
          %v1998 = vpack.c.bf16 %v1886, %v1884
          %v1999 = vpack.c.bf16 %v1887, %v1885
          %v2000 = vpack.c.bf16 %v1890, %v1888
          %v2001 = vpack.c.bf16 %v1891, %v1889
          %v2002 = vpack.c.bf16 %v1894, %v1892
          %v2003 = vpack.c.bf16 %v1895, %v1893
          %v2004 = vpack.c.bf16 %v1898, %v1896
          %v2005 = vpack.c.bf16 %v1899, %v1897
          %v2006 = vpack.c.bf16 %v1902, %v1900
          %v2007 = vpack.c.bf16 %v1903, %v1901
          %v2008 = vpack.c.bf16 %v1906, %v1904
          %v2009 = vpack.c.bf16 %v1907, %v1905
          %v2010 = vpack.c.bf16 %v1910, %v1908
          %v2011 = vpack.c.bf16 %v1911, %v1909
          %v2012 = vpack.c.bf16 %v1914, %v1912
          %v2013 = vpack.c.bf16 %v1915, %v1913
          %v2014 = vpack.c.bf16 %v1918, %v1916
          %v2015 = vpack.c.bf16 %v1919, %v1917
          %v2016 = vpack.c.bf16 %v1922, %v1920
          %v2017 = vpack.c.bf16 %v1923, %v1921
          %v2018 = vpack.c.bf16 %v1926, %v1924
          %v2019 = vpack.c.bf16 %v1927, %v1925
          %v2020 = vpack.c.bf16 %v1930, %v1928
          %v2021 = vpack.c.bf16 %v1931, %v1929
          %v2022 = vpack.c.bf16 %v1934, %v1932
          %v2023 = vpack.c.bf16 %v1935, %v1933
          %v2024 = vpack.c.bf16 %v1938, %v1936
          %v2025 = vpack.c.bf16 %v1939, %v1937
          %v2026 = vpack.c.bf16 %v1942, %v1940
          %v2027 = vpack.c.bf16 %v1943, %v1941
          %v2028 = vpack.c.bf16 %v1946, %v1944
          %v2029 = vpack.c.bf16 %v1947, %v1945
          %v2030 = vpack.c.bf16 %v1950, %v1948
          %v2031 = vpack.c.bf16 %v1951, %v1949
          %v2032 = vpack.c.bf16 %v1954, %v1952
          %v2033 = vpack.c.bf16 %v1955, %v1953
          %v2034 = vpack.c.bf16 %v1958, %v1956
          %v2035 = vpack.c.bf16 %v1959, %v1957
          %v2036 = vpack.c.bf16 %v1962, %v1960
          %v2037 = vpack.c.bf16 %v1963, %v1961
          %v2038 = vpack.c.bf16 %v1966, %v1964
          %v2039 = vpack.c.bf16 %v1967, %v1965
          %v2040 = vpack.c.bf16 %v1970, %v1968
          %v2041 = vpack.c.bf16 %v1971, %v1969
          %v2042 = vpack.c.bf16 %v1974, %v1972
          %v2043 = vpack.c.bf16 %v1975, %v1973
          %v2044 = vpack.c.bf16 %v1978, %v1976
          %v2045 = vpack.c.bf16 %v1979, %v1977
          %v2046 = vpack.c.bf16 %v1982, %v1980
          %v2047 = vpack.c.bf16 %v1983, %v1981
          %v2112 = vunpack.c.l.b16 %v1984
          %v2113 = vunpack.c.l.b16 %v1985
          %v2114 = vunpack.c.h.b16 %v1984
          %v2115 = vunpack.c.h.b16 %v1985
          %v2116 = vunpack.c.l.b16 %v1986
          %v2117 = vunpack.c.l.b16 %v1987
          %v2118 = vunpack.c.h.b16 %v1986
          %v2119 = vunpack.c.h.b16 %v1987
          %v2120 = vunpack.c.l.b16 %v1988
          %v2121 = vunpack.c.l.b16 %v1989
          %v2122 = vunpack.c.h.b16 %v1988
          %v2123 = vunpack.c.h.b16 %v1989
          %v2124 = vunpack.c.l.b16 %v1990
          %v2125 = vunpack.c.l.b16 %v1991
          %v2126 = vunpack.c.h.b16 %v1990
          %v2127 = vunpack.c.h.b16 %v1991
          %v2128 = vunpack.c.l.b16 %v1992
          %v2129 = vunpack.c.l.b16 %v1993
          %v2130 = vunpack.c.h.b16 %v1992
          %v2131 = vunpack.c.h.b16 %v1993
          %v2132 = vunpack.c.l.b16 %v1994
          %v2133 = vunpack.c.l.b16 %v1995
          %v2134 = vunpack.c.h.b16 %v1994
          %v2135 = vunpack.c.h.b16 %v1995
          %v2136 = vunpack.c.l.b16 %v1996
          %v2137 = vunpack.c.l.b16 %v1997
          %v2138 = vunpack.c.h.b16 %v1996
          %v2139 = vunpack.c.h.b16 %v1997
          %v2140 = vunpack.c.l.b16 %v1998
          %v2141 = vunpack.c.l.b16 %v1999
          %v2142 = vunpack.c.h.b16 %v1998
          %v2143 = vunpack.c.h.b16 %v1999
          %v2144 = vunpack.c.l.b16 %v2000
          %v2145 = vunpack.c.l.b16 %v2001
          %v2146 = vunpack.c.h.b16 %v2000
          %v2147 = vunpack.c.h.b16 %v2001
          %v2148 = vunpack.c.l.b16 %v2002
          %v2149 = vunpack.c.l.b16 %v2003
          %v2150 = vunpack.c.h.b16 %v2002
          %v2151 = vunpack.c.h.b16 %v2003
          %v2152 = vunpack.c.l.b16 %v2004
          %v2153 = vunpack.c.l.b16 %v2005
          %v2154 = vunpack.c.h.b16 %v2004
          %v2155 = vunpack.c.h.b16 %v2005
          %v2156 = vunpack.c.l.b16 %v2006
          %v2157 = vunpack.c.l.b16 %v2007
          %v2158 = vunpack.c.h.b16 %v2006
          %v2159 = vunpack.c.h.b16 %v2007
          %v2160 = vunpack.c.l.b16 %v2008
          %v2161 = vunpack.c.l.b16 %v2009
          %v2162 = vunpack.c.h.b16 %v2008
          %v2163 = vunpack.c.h.b16 %v2009
          %v2164 = vunpack.c.l.b16 %v2010
          %v2165 = vunpack.c.l.b16 %v2011
          %v2166 = vunpack.c.h.b16 %v2010
          %v2167 = vunpack.c.h.b16 %v2011
          %v2168 = vunpack.c.l.b16 %v2012
          %v2169 = vunpack.c.l.b16 %v2013
          %v2170 = vunpack.c.h.b16 %v2012
          %v2171 = vunpack.c.h.b16 %v2013
          %v2172 = vunpack.c.l.b16 %v2014
          %v2173 = vunpack.c.l.b16 %v2015
          %v2174 = vunpack.c.h.b16 %v2014
          %v2175 = vunpack.c.h.b16 %v2015
          %v2176 = vunpack.c.l.b16 %v2016
          %v2177 = vunpack.c.l.b16 %v2017
          %v2178 = vunpack.c.h.b16 %v2016
          %v2179 = vunpack.c.h.b16 %v2017
          %v2180 = vunpack.c.l.b16 %v2018
          %v2181 = vunpack.c.l.b16 %v2019
          %v2182 = vunpack.c.h.b16 %v2018
          %v2183 = vunpack.c.h.b16 %v2019
          %v2184 = vunpack.c.l.b16 %v2020
          %v2185 = vunpack.c.l.b16 %v2021
          %v2186 = vunpack.c.h.b16 %v2020
          %v2187 = vunpack.c.h.b16 %v2021
          %v2188 = vunpack.c.l.b16 %v2022
          %v2189 = vunpack.c.l.b16 %v2023
          %v2190 = vunpack.c.h.b16 %v2022
          %v2191 = vunpack.c.h.b16 %v2023
          %v2192 = vunpack.c.l.b16 %v2024
          %v2193 = vunpack.c.l.b16 %v2025
          %v2194 = vunpack.c.h.b16 %v2024
          %v2195 = vunpack.c.h.b16 %v2025
          %v2196 = vunpack.c.l.b16 %v2026
          %v2197 = vunpack.c.l.b16 %v2027
          %v2198 = vunpack.c.h.b16 %v2026
          %v2199 = vunpack.c.h.b16 %v2027
          %v2200 = vunpack.c.l.b16 %v2028
          %v2201 = vunpack.c.l.b16 %v2029
          %v2202 = vunpack.c.h.b16 %v2028
          %v2203 = vunpack.c.h.b16 %v2029
          %v2204 = vunpack.c.l.b16 %v2030
          %v2205 = vunpack.c.l.b16 %v2031
          %v2206 = vunpack.c.h.b16 %v2030
          %v2207 = vunpack.c.h.b16 %v2031
          %v2208 = vunpack.c.l.b16 %v2032
          %v2209 = vunpack.c.l.b16 %v2033
          %v2210 = vunpack.c.h.b16 %v2032
          %v2211 = vunpack.c.h.b16 %v2033
          %v2212 = vunpack.c.l.b16 %v2034
          %v2213 = vunpack.c.l.b16 %v2035
          %v2214 = vunpack.c.h.b16 %v2034
          %v2215 = vunpack.c.h.b16 %v2035
          %v2216 = vunpack.c.l.b16 %v2036
          %v2217 = vunpack.c.l.b16 %v2037
          %v2218 = vunpack.c.h.b16 %v2036
          %v2219 = vunpack.c.h.b16 %v2037
          %v2220 = vunpack.c.l.b16 %v2038
          %v2221 = vunpack.c.l.b16 %v2039
          %v2222 = vunpack.c.h.b16 %v2038
          %v2223 = vunpack.c.h.b16 %v2039
          %v2224 = vunpack.c.l.b16 %v2040
          %v2225 = vunpack.c.l.b16 %v2041
          %v2226 = vunpack.c.h.b16 %v2040
          %v2227 = vunpack.c.h.b16 %v2041
          %v2228 = vunpack.c.l.b16 %v2042
          %v2229 = vunpack.c.l.b16 %v2043
          %v2230 = vunpack.c.h.b16 %v2042
          %v2231 = vunpack.c.h.b16 %v2043
          %v2232 = vunpack.c.l.b16 %v2044
          %v2233 = vunpack.c.l.b16 %v2045
          %v2234 = vunpack.c.h.b16 %v2044
          %v2235 = vunpack.c.h.b16 %v2045
          %v2236 = vunpack.c.l.b16 %v2046
          %v2237 = vunpack.c.l.b16 %v2047
          %v2238 = vunpack.c.h.b16 %v2046
          %v2239 = vunpack.c.h.b16 %v2047
          %v2240 = vpack.c.b16 %v2113, %v2112
          %v2241 = vpack.c.b16 %v2115, %v2114
          %v2242 = vpack.c.b16 %v2117, %v2116
          %v2243 = vpack.c.b16 %v2119, %v2118
          %v2244 = vpack.c.b16 %v2121, %v2120
          %v2245 = vpack.c.b16 %v2123, %v2122
          %v2246 = vpack.c.b16 %v2125, %v2124
          %v2247 = vpack.c.b16 %v2127, %v2126
          %v2248 = vpack.c.b16 %v2129, %v2128
          %v2249 = vpack.c.b16 %v2131, %v2130
          %v2250 = vpack.c.b16 %v2133, %v2132
          %v2251 = vpack.c.b16 %v2135, %v2134
          %v2252 = vpack.c.b16 %v2137, %v2136
          %v2253 = vpack.c.b16 %v2139, %v2138
          %v2254 = vpack.c.b16 %v2141, %v2140
          %v2255 = vpack.c.b16 %v2143, %v2142
          %v2256 = vpack.c.b16 %v2145, %v2144
          %v2257 = vpack.c.b16 %v2147, %v2146
          %v2258 = vpack.c.b16 %v2149, %v2148
          %v2259 = vpack.c.b16 %v2151, %v2150
          %v2260 = vpack.c.b16 %v2153, %v2152
          %v2261 = vpack.c.b16 %v2155, %v2154
          %v2262 = vpack.c.b16 %v2157, %v2156
          %v2263 = vpack.c.b16 %v2159, %v2158
          %v2264 = vpack.c.b16 %v2161, %v2160
          %v2265 = vpack.c.b16 %v2163, %v2162
          %v2266 = vpack.c.b16 %v2165, %v2164
          %v2267 = vpack.c.b16 %v2167, %v2166
          %v2268 = vpack.c.b16 %v2169, %v2168
          %v2269 = vpack.c.b16 %v2171, %v2170
          %v2270 = vpack.c.b16 %v2173, %v2172
          %v2271 = vpack.c.b16 %v2175, %v2174
          %v2272 = vpack.c.b16 %v2177, %v2176
          %v2273 = vpack.c.b16 %v2179, %v2178
          %v2274 = vpack.c.b16 %v2181, %v2180
          %v2275 = vpack.c.b16 %v2183, %v2182
          %v2276 = vpack.c.b16 %v2185, %v2184
          %v2277 = vpack.c.b16 %v2187, %v2186
          %v2278 = vpack.c.b16 %v2189, %v2188
          %v2279 = vpack.c.b16 %v2191, %v2190
          %v2280 = vpack.c.b16 %v2193, %v2192
          %v2281 = vpack.c.b16 %v2195, %v2194
          %v2282 = vpack.c.b16 %v2197, %v2196
          %v2283 = vpack.c.b16 %v2199, %v2198
          %v2284 = vpack.c.b16 %v2201, %v2200
          %v2285 = vpack.c.b16 %v2203, %v2202
          %v2286 = vpack.c.b16 %v2205, %v2204
          %v2287 = vpack.c.b16 %v2207, %v2206
          %v2288 = vpack.c.b16 %v2209, %v2208
          %v2289 = vpack.c.b16 %v2211, %v2210
          %v2290 = vpack.c.b16 %v2213, %v2212
          %v2291 = vpack.c.b16 %v2215, %v2214
          %v2292 = vpack.c.b16 %v2217, %v2216
          %v2293 = vpack.c.b16 %v2219, %v2218
          %v2294 = vpack.c.b16 %v2221, %v2220
          %v2295 = vpack.c.b16 %v2223, %v2222
          %v2296 = vpack.c.b16 %v2225, %v2224
          %v2297 = vpack.c.b16 %v2227, %v2226
          %v2298 = vpack.c.b16 %v2229, %v2228
          %v2299 = vpack.c.b16 %v2231, %v2230
          %v2300 = vpack.c.b16 %v2233, %v2232
          %v2301 = vpack.c.b16 %v2235, %v2234
          %v2302 = vpack.c.b16 %v2237, %v2236
          %v2303 = vpack.c.b16 %v2239, %v2238
          %2368 = vst [vmem:[%s256] sm:$0xff] %v2240
          %2369 = vst [vmem:[%s256 + $0x8] sm:$0xff] %v2241
          %2370 = vst [vmem:[%s256 + $0x10] sm:$0xff] %v2242
          %2371 = vst [vmem:[%s256 + $0x18] sm:$0xff] %v2243
          %2372 = vst [vmem:[%s256 + $0x20] sm:$0xff] %v2244
          %2373 = vst [vmem:[%s256 + $0x28] sm:$0xff] %v2245
          %2374 = vst [vmem:[%s256 + $0x30] sm:$0xff] %v2246
          %2375 = vst [vmem:[%s256 + $0x38] sm:$0xff] %v2247
          %2376 = vst [vmem:[%s256 + $0x40] sm:$0xff] %v2248
          %2377 = vst [vmem:[%s256 + $0x48] sm:$0xff] %v2249
          %2378 = vst [vmem:[%s256 + $0x50] sm:$0xff] %v2250
          %2379 = vst [vmem:[%s256 + $0x58] sm:$0xff] %v2251
          %2380 = vst [vmem:[%s256 + $0x60] sm:$0xff] %v2252
          %2381 = vst [vmem:[%s256 + $0x68] sm:$0xff] %v2253
          %2382 = vst [vmem:[%s256 + $0x70] sm:$0xff] %v2254
          %2383 = vst [vmem:[%s256 + $0x78] sm:$0xff] %v2255
          %2384 = vst [vmem:[%s256 + $0x80] sm:$0xff] %v2256
          %2385 = vst [vmem:[%s256 + $0x88] sm:$0xff] %v2257
          %2386 = vst [vmem:[%s256 + $0x90] sm:$0xff] %v2258
          %2387 = vst [vmem:[%s256 + $0x98] sm:$0xff] %v2259
          %2388 = vst [vmem:[%s256 + $0xa0] sm:$0xff] %v2260
          %2389 = vst [vmem:[%s256 + $0xa8] sm:$0xff] %v2261
          %2390 = vst [vmem:[%s256 + $0xb0] sm:$0xff] %v2262
          %2391 = vst [vmem:[%s256 + $0xb8] sm:$0xff] %v2263
          %2392 = vst [vmem:[%s256 + $0xc0] sm:$0xff] %v2264
          %2393 = vst [vmem:[%s256 + $0xc8] sm:$0xff] %v2265
          %2394 = vst [vmem:[%s256 + $0xd0] sm:$0xff] %v2266
          %2395 = vst [vmem:[%s256 + $0xd8] sm:$0xff] %v2267
          %2396 = vst [vmem:[%s256 + $0xe0] sm:$0xff] %v2268
          %2397 = vst [vmem:[%s256 + $0xe8] sm:$0xff] %v2269
          %2398 = vst [vmem:[%s256 + $0xf0] sm:$0xff] %v2270
          %2399 = vst [vmem:[%s256 + $0xf8] sm:$0xff] %v2271
          %2400 = vst [vmem:[%s256 + $0x100] sm:$0xff] %v2272
          %2401 = vst [vmem:[%s256 + $0x108] sm:$0xff] %v2273
          %2402 = vst [vmem:[%s256 + $0x110] sm:$0xff] %v2274
          %2403 = vst [vmem:[%s256 + $0x118] sm:$0xff] %v2275
          %2404 = vst [vmem:[%s256 + $0x120] sm:$0xff] %v2276
          %2405 = vst [vmem:[%s256 + $0x128] sm:$0xff] %v2277
          %2406 = vst [vmem:[%s256 + $0x130] sm:$0xff] %v2278
          %2407 = vst [vmem:[%s256 + $0x138] sm:$0xff] %v2279
          %2408 = vst [vmem:[%s256 + $0x140] sm:$0xff] %v2280
          %2409 = vst [vmem:[%s256 + $0x148] sm:$0xff] %v2281
          %2410 = vst [vmem:[%s256 + $0x150] sm:$0xff] %v2282
          %2411 = vst [vmem:[%s256 + $0x158] sm:$0xff] %v2283
          %2412 = vst [vmem:[%s256 + $0x160] sm:$0xff] %v2284
          %2413 = vst [vmem:[%s256 + $0x168] sm:$0xff] %v2285
          %2414 = vst [vmem:[%s256 + $0x170] sm:$0xff] %v2286
          %2415 = vst [vmem:[%s256 + $0x178] sm:$0xff] %v2287
          %2416 = vst [vmem:[%s256 + $0x180] sm:$0xff] %v2288
          %2417 = vst [vmem:[%s256 + $0x188] sm:$0xff] %v2289
          %2418 = vst [vmem:[%s256 + $0x190] sm:$0xff] %v2290
          %2419 = vst [vmem:[%s256 + $0x198] sm:$0xff] %v2291
          %2420 = vst [vmem:[%s256 + $0x1a0] sm:$0xff] %v2292
          %2421 = vst [vmem:[%s256 + $0x1a8] sm:$0xff] %v2293
          %2422 = vst [vmem:[%s256 + $0x1b0] sm:$0xff] %v2294
          %2423 = vst [vmem:[%s256 + $0x1b8] sm:$0xff] %v2295
          %2424 = vst [vmem:[%s256 + $0x1c0] sm:$0xff] %v2296
          %2425 = vst [vmem:[%s256 + $0x1c8] sm:$0xff] %v2297
          %2426 = vst [vmem:[%s256 + $0x1d0] sm:$0xff] %v2298
          %2427 = vst [vmem:[%s256 + $0x1d8] sm:$0xff] %v2299
          %2428 = vst [vmem:[%s256 + $0x1e0] sm:$0xff] %v2300
          %2429 = vst [vmem:[%s256 + $0x1e8] sm:$0xff] %v2301
          %2430 = vst [vmem:[%s256 + $0x1f0] sm:$0xff] %v2302
          %2431 = vst [vmem:[%s256 + $0x1f8] sm:$0xff] %v2303
        $region48: #{tpu_custom_call.1} parent=31 // pred_fallthru
          _
        %s2432 = sand.u32 %s132, 1
        %s2433 = scalar_lea.sflag [#allocation5], %s2432
        %s2434 = sand.u32 %s132, 1
        %s2435 = smul.addr %s2434, 512
        %s2436 = scalar_lea.vmem [#allocation8], %s2435
        // Predicated region
        $region49: #{tpu_custom_call.1} parent=31 // pred_check
          %p2437 = pneg %p142
        $region50: #{tpu_custom_call.1} parent=31 // pred_check_branch
          %2439 = sbr.rel (%p2437) target = $region52
        $region51: #{tpu_custom_call.1} parent=31 // pred_region
          %s2440 = smul.u32 64, %s27
          %s2441 = smul.u32 2, %s26
          %s2443 = ssub.s32 8192, 8192
          %2444 = vsyncadd %s2433, %s2443
          %s2445 = smul.addr %s2440, 6
          %s2446 = sadd.s32 %s2441, %s2445
          %s2447 = smul.addr %s2446, 64
          %s2448 = scalar_lea.hbm %s3, %s2447
          %s2449 = sshll.u32 %s2436, 4
          %s2450 = int_to_ptr.vmem [resolvable:$true] %s2449
          %2455 = dma.vmem_to_hbm [thread:$0]  %s2450, 8192, %s2448, %s2433, 128, 384, 8
        $region52: #{tpu_custom_call.1} parent=31 // pred_fallthru
          _
      $region32: #{tpu_custom_call.1} parent=5 // pred_fallthru
        _
      %p2456 = scmp.le.s32.totalorder 2, %s16
      // Predicated region
      $region53: #{tpu_custom_call.1} parent=5 // pred_check
        %p2457 = pneg %p2456
      $region54: #{tpu_custom_call.1} parent=5 // pred_check_branch
        %2459 = sbr.rel (%p2457) target = $region56
      $region55: #{tpu_custom_call.1} parent=5 // pred_region
        %s2460 = ssub.s32 %s16, 2
        // Predicated region
        $region57: #{tpu_custom_call.1} parent=55 // pred_check
          %p2461 = pneg %p148
        $region58: #{tpu_custom_call.1} parent=55 // pred_check_branch
          %2463 = sbr.rel (%p2461) target = $region60
        $region59: #{tpu_custom_call.1} parent=55 // pred_region
          %s2464 = sand.u32 %s133, 1
          %s2465 = scalar_lea.sflag [#allocation5], %s2464
          %s2466 = sand.u32 %s133, 1
          %s2467 = smul.addr %s2466, 512
          %s2468 = scalar_lea.vmem [#allocation8], %s2467
          %2469 = dma.done %s2465, 8192
        $region60: #{tpu_custom_call.1} parent=55 // pred_fallthru
          _
      $region56: #{tpu_custom_call.1} parent=5 // pred_fallthru
        _
    $region6: #{tpu_custom_call.1} parent=1 // loop_footer
      %s20 = sadd.s32 1, %s16
    $region7: #{tpu_custom_call.1} parent=1 // loop_footer_branch
      %15 = sbr.rel target = $region3
    $region8: #{tpu_custom_call.1} parent=1 // loop_exit
      _
    %2470 = vsyncpa [#allocation4], 1
    %s2471 = scalar_lea.sflag [#allocation4], 1
    %2472 = vsyncpa %s2471, 1
    %2473 = vsyncpa [#allocation7], 1
    %s2474 = scalar_lea.sflag [#allocation7], 1
    %2475 = vsyncpa %s2474, 1
    %2476 = vsyncpa [#allocation5], 1
    %s2477 = scalar_lea.sflag [#allocation5], 1
    %2478 = vsyncpa %s2477, 1

</llo_original>
